<compile_context>
chip_gen: v7x
topology: tpu7x:2x2x1
jax: 0.10.0
libtpu: 0.0.40
codegen_flags: <defaults>
</compile_context>

<pallas_src>
import jax
import jax.numpy as jnp
from jax.experimental import pallas as pl
from jax.experimental.pallas import tpu as pltpu


def encoder_gru_kernel(ids_ref, table_hbm, h_ref, wih_ref, whh_ref,
                       bih_ref, bhh_ref, out_ref, xbuf, sems):
    """One GRU step for the whole batch with an in-kernel embedding gather.

    ids_ref  : (B,)       int32  SMEM (scalar prefetch) token indices
    table_hbm: (V, E)     HBM ref (memory_space=pl.ANY), gathered via DMA
    h_ref    : (B, Hp)    f32    previous hidden state (zero-padded H..Hp)
    wih_ref  : (E, 3*Hp)         fused input->hidden weights, gates [r, z, n]
    whh_ref  : (Hp, 3*Hp)        fused hidden->hidden weights
    bih_ref  : (1, 3*Hp)  f32
    bhh_ref  : (1, 3*Hp)  f32
    out_ref  : (B, Hp)    f32    new hidden state (== GRU output)
    xbuf     : (B, E)            VMEM scratch for gathered embeddings
    sems     : (B,)              DMA semaphores, one per gathered row
    """
    B, Hp = out_ref.shape

    # ---- Embedding gather: B small row DMAs HBM -> VMEM (issue all, then wait).
    for b in range(B):
        idx = ids_ref[b]
        pltpu.make_async_copy(table_hbm.at[pl.ds(idx, 1), :],
                              xbuf.at[pl.ds(b, 1), :],
                              sems.at[b]).start()
    for b in range(B):
        idx = ids_ref[b]
        pltpu.make_async_copy(table_hbm.at[pl.ds(idx, 1), :],
                              xbuf.at[pl.ds(b, 1), :],
                              sems.at[b]).wait()

    x = xbuf[...]                     # (B, E)
    h = h_ref[...]                    # (B, Hp), f32

    # ---- Two fused gate matmuls (MXU), accumulate in f32.
    gi = jnp.dot(x, wih_ref[...], preferred_element_type=jnp.float32) + bih_ref[...]
    gh = jnp.dot(h, whh_ref[...], preferred_element_type=jnp.float32) + bhh_ref[...]

    # ---- GRU gates (all element-wise math in f32; slices are 128-aligned).
    r = jax.nn.sigmoid(gi[:, :Hp] + gh[:, :Hp])
    z = jax.nn.sigmoid(gi[:, Hp:2 * Hp] + gh[:, Hp:2 * Hp])
    n = jnp.tanh(gi[:, 2 * Hp:] + r * gh[:, 2 * Hp:])
    h_new = (1.0 - z) * n + z * h

    out_ref[...] = h_new.astype(out_ref.dtype)


def prepare_encoder_params(embedding_matrix, w_ih, w_hh, b_ih, b_hh,
                           param_dtype=jnp.float32):
    """One-time (non-jitted) weight repack.

    PyTorch GRU layout: w_ih (3H, E), w_hh (3H, H), biases (3H,), gates [r,z,n].
    Repacked to fused, lane-padded matrices so the kernel does 2 matmuls.
    `param_dtype=jnp.bfloat16` halves weight/table DMA bytes on v6e/v7x
    (biases and element-wise math stay f32).
    """
    V, E = embedding_matrix.shape
    H = w_ih.shape[0] // 3
    Hp = ((H + 127) // 128) * 128          # lane-pad hidden dim

    def pack_w(w, in_dim, pad_in):
        w3 = w.reshape(3, H, in_dim)                       # (gate, out, in)
        w3 = jnp.pad(w3, ((0, 0), (0, Hp - H), (0, pad_in)))
        return jnp.transpose(w3, (2, 0, 1)).reshape(in_dim + pad_in, 3 * Hp)

    def pack_b(b):
        b3 = jnp.pad(b.reshape(3, H), ((0, 0), (0, Hp - H)))
        return b3.reshape(1, 3 * Hp).astype(jnp.float32)

    return {
        "table": embedding_matrix.astype(param_dtype),          # (V, E)
        "W_ih": pack_w(w_ih, E, 0).astype(param_dtype),         # (E, 3*Hp)
        "W_hh": pack_w(w_hh, H, Hp - H).astype(param_dtype),    # (Hp, 3*Hp)
        "b_ih": pack_b(b_ih),                                   # (1, 3*Hp) f32
        "b_hh": pack_b(b_hh),                                   # (1, 3*Hp) f32
    }


@jax.jit
def encoder_rnn_forward(inp, hidden, params):
    """Pallas implementation of EncoderRNN.forward(inp, hidden)."""
    table = params["table"]
    W_ih, W_hh = params["W_ih"], params["W_hh"]
    b_ih, b_hh = params["b_ih"], params["b_hh"]

    ids = inp.reshape(-1).astype(jnp.int32)          # (B,)
    B = ids.shape[0]
    H = hidden.shape[-1]
    Hp = W_hh.shape[0]
    E = table.shape[1]

    h0 = hidden.reshape(B, H).astype(jnp.float32)
    h0 = jnp.pad(h0, ((0, 0), (0, Hp - H)))          # (B, Hp), padded cols = 0

    h_new_p = pl.pallas_call(
        encoder_gru_kernel,
        out_shape=jax.ShapeDtypeStruct((B, Hp), jnp.float32),
        grid_spec=pltpu.PrefetchScalarGridSpec(
            num_scalar_prefetch=1,                   # ids -> SMEM
            grid=(1,),
            in_specs=[
                pl.BlockSpec(memory_space=pl.ANY),                    # table in HBM
                pl.BlockSpec((B, Hp), lambda i, ids_ref: (0, 0)),     # h
                pl.BlockSpec((E, 3 * Hp), lambda i, ids_ref: (0, 0)),  # W_ih
                pl.BlockSpec((Hp, 3 * Hp), lambda i, ids_ref: (0, 0)),  # W_hh
                pl.BlockSpec((1, 3 * Hp), lambda i, ids_ref: (0, 0)),  # b_ih
                pl.BlockSpec((1, 3 * Hp), lambda i, ids_ref: (0, 0)),  # b_hh
            ],
            out_specs=pl.BlockSpec((B, Hp), lambda i, ids_ref: (0, 0)),
            scratch_shapes=[
                pltpu.VMEM((B, E), table.dtype),      # gathered embeddings
                pltpu.SemaphoreType.DMA((B,)),        # one sem per gathered row
            ],
        ),
        compiler_params=pltpu.CompilerParams(
            dimension_semantics=("arbitrary",)),
    )(ids, table, h0, W_ih, W_hh, b_ih, b_hh)

    h_new = h_new_p[:, :H]                           # drop lane padding
    output = h_new.reshape(1, B, H)                  # (seq=1, B, H)
    hidden_new = h_new.reshape(1, B, H)              # (num_layers=1, B, H)
    return output, hidden_new


def _ref_forward(inp, hidden, emb, w_ih, w_hh, b_ih, b_hh):
    """Pure-JAX reference matching torch.nn.GRU single-step semantics."""
    x = emb[inp.reshape(-1)]                         # (B, E)
    h = hidden.reshape(x.shape[0], -1)               # (B, H)
    H = h.shape[-1]
    gi = x @ w_ih.T + b_ih
    gh = h @ w_hh.T + b_hh
    r = jax.nn.sigmoid(gi[:, :H] + gh[:, :H])
    z = jax.nn.sigmoid(gi[:, H:2 * H] + gh[:, H:2 * H])
    n = jnp.tanh(gi[:, 2 * H:] + r * gh[:, 2 * H:])
    h_new = (1.0 - z) * n + z * h
    return h_new[None], h_new[None]


if __name__ == "__main__":
    # Small deterministic setup: vocab=40, embedding_dim=16, hidden=32, batch=8.
    V, E, H, B = 40, 16, 32, 8
    key = jax.random.PRNGKey(0)
    k_emb, k_ids, k_wih, k_whh, k_bih, k_bhh = jax.random.split(key, 6)

    embedding_matrix = jax.random.normal(k_emb, (V, E), dtype=jnp.float32)
    inp = jax.random.randint(k_ids, (B,), 0, V, dtype=jnp.int32)
    hidden0 = jnp.zeros((1, B, H), dtype=jnp.float32)   # EncoderRNN.init_hidden

    scale = 1.0 / jnp.sqrt(jnp.float32(H))               # PyTorch GRU init range
    w_ih = jax.random.uniform(k_wih, (3 * H, E), jnp.float32, -scale, scale)
    w_hh = jax.random.uniform(k_whh, (3 * H, H), jnp.float32, -scale, scale)
    b_ih = jax.random.uniform(k_bih, (3 * H,), jnp.float32, -scale, scale)
    b_hh = jax.random.uniform(k_bhh, (3 * H,), jnp.float32, -scale, scale)

    # One-time weight repack (hoisted out of the per-step jitted forward).
    # Use param_dtype=jnp.bfloat16 on v6e/v7x to halve weight/table DMA bytes.
    params = prepare_encoder_params(embedding_matrix, w_ih, w_hh, b_ih, b_hh)

    output, hidden1 = encoder_rnn_forward(inp, hidden0, params)
    jax.block_until_ready((output, hidden1))

    out_ref, hid_ref = _ref_forward(
        inp, hidden0, embedding_matrix, w_ih, w_hh, b_ih, b_hh)
    assert output.shape == (1, B, H) and hidden1.shape == (1, B, H)
    assert jnp.allclose(output, out_ref, atol=1e-5, rtol=1e-5)
    assert jnp.allclose(hidden1, hid_ref, atol=1e-5, rtol=1e-5)

    print("KERNEL_OK")
</pallas_src>

<mosaic_0001>
module attributes {stable_mosaic.version = 11 : i64} {
  func.func @encoder_gru_kernel(%arg0: i32, %arg1: memref<8xi32, #tpu.memory_space<smem>>, %arg2: memref<40x16xf32, #tpu.memory_space<any>>, %arg3: memref<8x128xf32, #tpu.memory_space<vmem>>, %arg4: memref<16x384xf32, #tpu.memory_space<vmem>>, %arg5: memref<128x384xf32, #tpu.memory_space<vmem>>, %arg6: memref<1x384xf32, #tpu.memory_space<vmem>>, %arg7: memref<1x384xf32, #tpu.memory_space<vmem>>, %arg8: memref<8x128xf32, #tpu.memory_space<vmem>>, %arg9: memref<8x16xf32, #tpu.memory_space<vmem>>, %arg10: memref<8x!tpu.dma_semaphore, #tpu.memory_space<semaphore_mem>>) attributes {dimension_semantics = [#tpu.dimension_semantics<arbitrary>], iteration_bounds = array<i64: 1>, scalar_prefetch = 1 : i64, scratch_operands = 2 : i64, tpu.core_type = #tpu.core_type<tc>, window_params = [{}, {pipeline_mode = #tpu.pipeline_mode<synchronous>, transform_indices = @transform_1, window_bounds = array<i64: 8, 128>}, {pipeline_mode = #tpu.pipeline_mode<synchronous>, transform_indices = @transform_2, window_bounds = array<i64: 16, 384>}, {pipeline_mode = #tpu.pipeline_mode<synchronous>, transform_indices = @transform_3, window_bounds = array<i64: 128, 384>}, {pipeline_mode = #tpu.pipeline_mode<synchronous>, transform_indices = @transform_4, window_bounds = array<i64: 1, 384>}, {pipeline_mode = #tpu.pipeline_mode<synchronous>, transform_indices = @transform_5, window_bounds = array<i64: 1, 384>}, {pipeline_mode = #tpu.pipeline_mode<synchronous>, transform_indices = @transform_6, window_bounds = array<i64: 8, 128>}]} {
    %c0 = arith.constant 0 : index
    %0 = memref.load %arg1[%c0] : memref<8xi32, #tpu.memory_space<smem>>
    %c0_i32 = arith.constant 0 : i32
    %c0_i32_0 = arith.constant 0 : i32
    %1 = tpu.memref_slice %arg2[%0, %c0_i32_0] : memref<40x16xf32, #tpu.memory_space<any>> -> memref<1x16xf32, #tpu.memory_space<any>>
    %c0_i32_1 = arith.constant 0 : i32
    %c0_i32_2 = arith.constant 0 : i32
    %2 = tpu.memref_slice %arg9[%c0_i32_1, %c0_i32_2] : memref<8x16xf32, #tpu.memory_space<vmem>> -> memref<1x16xf32, #tpu.memory_space<vmem>>
    %3 = tpu.memref_slice %arg10[%c0_i32] : memref<8x!tpu.dma_semaphore, #tpu.memory_space<semaphore_mem>> -> memref<1x!tpu.dma_semaphore, #tpu.memory_space<semaphore_mem>>
    %4 = tpu.memref_squeeze %3 : memref<1x!tpu.dma_semaphore, #tpu.memory_space<semaphore_mem>> -> memref<!tpu.dma_semaphore, #tpu.memory_space<semaphore_mem>>
    tpu.enqueue_dma source(%1 : memref<1x16xf32, #tpu.memory_space<any>>) target(%2 : memref<1x16xf32, #tpu.memory_space<vmem>>) target_semaphore(%4 : memref<!tpu.dma_semaphore, #tpu.memory_space<semaphore_mem>>)
    %c1 = arith.constant 1 : index
    %5 = memref.load %arg1[%c1] : memref<8xi32, #tpu.memory_space<smem>>
    %c1_i32 = arith.constant 1 : i32
    %c0_i32_3 = arith.constant 0 : i32
    %6 = tpu.memref_slice %arg2[%5, %c0_i32_3] : memref<40x16xf32, #tpu.memory_space<any>> -> memref<1x16xf32, #tpu.memory_space<any>>
    %c1_i32_4 = arith.constant 1 : i32
    %c0_i32_5 = arith.constant 0 : i32
    %7 = tpu.memref_slice %arg9[%c1_i32_4, %c0_i32_5] : memref<8x16xf32, #tpu.memory_space<vmem>> -> memref<1x16xf32, #tpu.memory_space<vmem>>
    %8 = tpu.memref_slice %arg10[%c1_i32] : memref<8x!tpu.dma_semaphore, #tpu.memory_space<semaphore_mem>> -> memref<1x!tpu.dma_semaphore, #tpu.memory_space<semaphore_mem>>
    %9 = tpu.memref_squeeze %8 : memref<1x!tpu.dma_semaphore, #tpu.memory_space<semaphore_mem>> -> memref<!tpu.dma_semaphore, #tpu.memory_space<semaphore_mem>>
    tpu.enqueue_dma source(%6 : memref<1x16xf32, #tpu.memory_space<any>>) target(%7 : memref<1x16xf32, #tpu.memory_space<vmem>>) target_semaphore(%9 : memref<!tpu.dma_semaphore, #tpu.memory_space<semaphore_mem>>)
    %c2 = arith.constant 2 : index
    %10 = memref.load %arg1[%c2] : memref<8xi32, #tpu.memory_space<smem>>
    %c2_i32 = arith.constant 2 : i32
    %c0_i32_6 = arith.constant 0 : i32
    %11 = tpu.memref_slice %arg2[%10, %c0_i32_6] : memref<40x16xf32, #tpu.memory_space<any>> -> memref<1x16xf32, #tpu.memory_space<any>>
    %c2_i32_7 = arith.constant 2 : i32
    %c0_i32_8 = arith.constant 0 : i32
    %12 = tpu.memref_slice %arg9[%c2_i32_7, %c0_i32_8] : memref<8x16xf32, #tpu.memory_space<vmem>> -> memref<1x16xf32, #tpu.memory_space<vmem>>
    %13 = tpu.memref_slice %arg10[%c2_i32] : memref<8x!tpu.dma_semaphore, #tpu.memory_space<semaphore_mem>> -> memref<1x!tpu.dma_semaphore, #tpu.memory_space<semaphore_mem>>
    %14 = tpu.memref_squeeze %13 : memref<1x!tpu.dma_semaphore, #tpu.memory_space<semaphore_mem>> -> memref<!tpu.dma_semaphore, #tpu.memory_space<semaphore_mem>>
    tpu.enqueue_dma source(%11 : memref<1x16xf32, #tpu.memory_space<any>>) target(%12 : memref<1x16xf32, #tpu.memory_space<vmem>>) target_semaphore(%14 : memref<!tpu.dma_semaphore, #tpu.memory_space<semaphore_mem>>)
    %c3 = arith.constant 3 : index
    %15 = memref.load %arg1[%c3] : memref<8xi32, #tpu.memory_space<smem>>
    %c3_i32 = arith.constant 3 : i32
    %c0_i32_9 = arith.constant 0 : i32
    %16 = tpu.memref_slice %arg2[%15, %c0_i32_9] : memref<40x16xf32, #tpu.memory_space<any>> -> memref<1x16xf32, #tpu.memory_space<any>>
    %c3_i32_10 = arith.constant 3 : i32
    %c0_i32_11 = arith.constant 0 : i32
    %17 = tpu.memref_slice %arg9[%c3_i32_10, %c0_i32_11] : memref<8x16xf32, #tpu.memory_space<vmem>> -> memref<1x16xf32, #tpu.memory_space<vmem>>
    %18 = tpu.memref_slice %arg10[%c3_i32] : memref<8x!tpu.dma_semaphore, #tpu.memory_space<semaphore_mem>> -> memref<1x!tpu.dma_semaphore, #tpu.memory_space<semaphore_mem>>
    %19 = tpu.memref_squeeze %18 : memref<1x!tpu.dma_semaphore, #tpu.memory_space<semaphore_mem>> -> memref<!tpu.dma_semaphore, #tpu.memory_space<semaphore_mem>>
    tpu.enqueue_dma source(%16 : memref<1x16xf32, #tpu.memory_space<any>>) target(%17 : memref<1x16xf32, #tpu.memory_space<vmem>>) target_semaphore(%19 : memref<!tpu.dma_semaphore, #tpu.memory_space<semaphore_mem>>)
    %c4 = arith.constant 4 : index
    %20 = memref.load %arg1[%c4] : memref<8xi32, #tpu.memory_space<smem>>
    %c4_i32 = arith.constant 4 : i32
    %c0_i32_12 = arith.constant 0 : i32
    %21 = tpu.memref_slice %arg2[%20, %c0_i32_12] : memref<40x16xf32, #tpu.memory_space<any>> -> memref<1x16xf32, #tpu.memory_space<any>>
    %c4_i32_13 = arith.constant 4 : i32
    %c0_i32_14 = arith.constant 0 : i32
    %22 = tpu.memref_slice %arg9[%c4_i32_13, %c0_i32_14] : memref<8x16xf32, #tpu.memory_space<vmem>> -> memref<1x16xf32, #tpu.memory_space<vmem>>
    %23 = tpu.memref_slice %arg10[%c4_i32] : memref<8x!tpu.dma_semaphore, #tpu.memory_space<semaphore_mem>> -> memref<1x!tpu.dma_semaphore, #tpu.memory_space<semaphore_mem>>
    %24 = tpu.memref_squeeze %23 : memref<1x!tpu.dma_semaphore, #tpu.memory_space<semaphore_mem>> -> memref<!tpu.dma_semaphore, #tpu.memory_space<semaphore_mem>>
    tpu.enqueue_dma source(%21 : memref<1x16xf32, #tpu.memory_space<any>>) target(%22 : memref<1x16xf32, #tpu.memory_space<vmem>>) target_semaphore(%24 : memref<!tpu.dma_semaphore, #tpu.memory_space<semaphore_mem>>)
    %c5 = arith.constant 5 : index
    %25 = memref.load %arg1[%c5] : memref<8xi32, #tpu.memory_space<smem>>
    %c5_i32 = arith.constant 5 : i32
    %c0_i32_15 = arith.constant 0 : i32
    %26 = tpu.memref_slice %arg2[%25, %c0_i32_15] : memref<40x16xf32, #tpu.memory_space<any>> -> memref<1x16xf32, #tpu.memory_space<any>>
    %c5_i32_16 = arith.constant 5 : i32
    %c0_i32_17 = arith.constant 0 : i32
    %27 = tpu.memref_slice %arg9[%c5_i32_16, %c0_i32_17] : memref<8x16xf32, #tpu.memory_space<vmem>> -> memref<1x16xf32, #tpu.memory_space<vmem>>
    %28 = tpu.memref_slice %arg10[%c5_i32] : memref<8x!tpu.dma_semaphore, #tpu.memory_space<semaphore_mem>> -> memref<1x!tpu.dma_semaphore, #tpu.memory_space<semaphore_mem>>
    %29 = tpu.memref_squeeze %28 : memref<1x!tpu.dma_semaphore, #tpu.memory_space<semaphore_mem>> -> memref<!tpu.dma_semaphore, #tpu.memory_space<semaphore_mem>>
    tpu.enqueue_dma source(%26 : memref<1x16xf32, #tpu.memory_space<any>>) target(%27 : memref<1x16xf32, #tpu.memory_space<vmem>>) target_semaphore(%29 : memref<!tpu.dma_semaphore, #tpu.memory_space<semaphore_mem>>)
    %c6 = arith.constant 6 : index
    %30 = memref.load %arg1[%c6] : memref<8xi32, #tpu.memory_space<smem>>
    %c6_i32 = arith.constant 6 : i32
    %c0_i32_18 = arith.constant 0 : i32
    %31 = tpu.memref_slice %arg2[%30, %c0_i32_18] : memref<40x16xf32, #tpu.memory_space<any>> -> memref<1x16xf32, #tpu.memory_space<any>>
    %c6_i32_19 = arith.constant 6 : i32
    %c0_i32_20 = arith.constant 0 : i32
    %32 = tpu.memref_slice %arg9[%c6_i32_19, %c0_i32_20] : memref<8x16xf32, #tpu.memory_space<vmem>> -> memref<1x16xf32, #tpu.memory_space<vmem>>
    %33 = tpu.memref_slice %arg10[%c6_i32] : memref<8x!tpu.dma_semaphore, #tpu.memory_space<semaphore_mem>> -> memref<1x!tpu.dma_semaphore, #tpu.memory_space<semaphore_mem>>
    %34 = tpu.memref_squeeze %33 : memref<1x!tpu.dma_semaphore, #tpu.memory_space<semaphore_mem>> -> memref<!tpu.dma_semaphore, #tpu.memory_space<semaphore_mem>>
    tpu.enqueue_dma source(%31 : memref<1x16xf32, #tpu.memory_space<any>>) target(%32 : memref<1x16xf32, #tpu.memory_space<vmem>>) target_semaphore(%34 : memref<!tpu.dma_semaphore, #tpu.memory_space<semaphore_mem>>)
    %c7 = arith.constant 7 : index
    %35 = memref.load %arg1[%c7] : memref<8xi32, #tpu.memory_space<smem>>
    %c7_i32 = arith.constant 7 : i32
    %c0_i32_21 = arith.constant 0 : i32
    %36 = tpu.memref_slice %arg2[%35, %c0_i32_21] : memref<40x16xf32, #tpu.memory_space<any>> -> memref<1x16xf32, #tpu.memory_space<any>>
    %c7_i32_22 = arith.constant 7 : i32
    %c0_i32_23 = arith.constant 0 : i32
    %37 = tpu.memref_slice %arg9[%c7_i32_22, %c0_i32_23] : memref<8x16xf32, #tpu.memory_space<vmem>> -> memref<1x16xf32, #tpu.memory_space<vmem>>
    %38 = tpu.memref_slice %arg10[%c7_i32] : memref<8x!tpu.dma_semaphore, #tpu.memory_space<semaphore_mem>> -> memref<1x!tpu.dma_semaphore, #tpu.memory_space<semaphore_mem>>
    %39 = tpu.memref_squeeze %38 : memref<1x!tpu.dma_semaphore, #tpu.memory_space<semaphore_mem>> -> memref<!tpu.dma_semaphore, #tpu.memory_space<semaphore_mem>>
    tpu.enqueue_dma source(%36 : memref<1x16xf32, #tpu.memory_space<any>>) target(%37 : memref<1x16xf32, #tpu.memory_space<vmem>>) target_semaphore(%39 : memref<!tpu.dma_semaphore, #tpu.memory_space<semaphore_mem>>)
    %c0_24 = arith.constant 0 : index
    %40 = memref.load %arg1[%c0_24] : memref<8xi32, #tpu.memory_space<smem>>
    %c0_i32_25 = arith.constant 0 : i32
    %c0_i32_26 = arith.constant 0 : i32
    %41 = tpu.memref_slice %arg2[%40, %c0_i32_26] : memref<40x16xf32, #tpu.memory_space<any>> -> memref<1x16xf32, #tpu.memory_space<any>>
    %c0_i32_27 = arith.constant 0 : i32
    %c0_i32_28 = arith.constant 0 : i32
    %42 = tpu.memref_slice %arg9[%c0_i32_27, %c0_i32_28] : memref<8x16xf32, #tpu.memory_space<vmem>> -> memref<1x16xf32, #tpu.memory_space<vmem>>
    %43 = tpu.memref_slice %arg10[%c0_i32_25] : memref<8x!tpu.dma_semaphore, #tpu.memory_space<semaphore_mem>> -> memref<1x!tpu.dma_semaphore, #tpu.memory_space<semaphore_mem>>
    %44 = tpu.memref_squeeze %43 : memref<1x!tpu.dma_semaphore, #tpu.memory_space<semaphore_mem>> -> memref<!tpu.dma_semaphore, #tpu.memory_space<semaphore_mem>>
    tpu.wait_dma2 semaphore(%44 : memref<!tpu.dma_semaphore, #tpu.memory_space<semaphore_mem>>) src(%41 : memref<1x16xf32, #tpu.memory_space<any>>) dst(%42 : memref<1x16xf32, #tpu.memory_space<vmem>>)
    %c1_29 = arith.constant 1 : index
    %45 = memref.load %arg1[%c1_29] : memref<8xi32, #tpu.memory_space<smem>>
    %c1_i32_30 = arith.constant 1 : i32
    %c0_i32_31 = arith.constant 0 : i32
    %46 = tpu.memref_slice %arg2[%45, %c0_i32_31] : memref<40x16xf32, #tpu.memory_space<any>> -> memref<1x16xf32, #tpu.memory_space<any>>
    %c1_i32_32 = arith.constant 1 : i32
    %c0_i32_33 = arith.constant 0 : i32
    %47 = tpu.memref_slice %arg9[%c1_i32_32, %c0_i32_33] : memref<8x16xf32, #tpu.memory_space<vmem>> -> memref<1x16xf32, #tpu.memory_space<vmem>>
    %48 = tpu.memref_slice %arg10[%c1_i32_30] : memref<8x!tpu.dma_semaphore, #tpu.memory_space<semaphore_mem>> -> memref<1x!tpu.dma_semaphore, #tpu.memory_space<semaphore_mem>>
    %49 = tpu.memref_squeeze %48 : memref<1x!tpu.dma_semaphore, #tpu.memory_space<semaphore_mem>> -> memref<!tpu.dma_semaphore, #tpu.memory_space<semaphore_mem>>
    tpu.wait_dma2 semaphore(%49 : memref<!tpu.dma_semaphore, #tpu.memory_space<semaphore_mem>>) src(%46 : memref<1x16xf32, #tpu.memory_space<any>>) dst(%47 : memref<1x16xf32, #tpu.memory_space<vmem>>)
    %c2_34 = arith.constant 2 : index
    %50 = memref.load %arg1[%c2_34] : memref<8xi32, #tpu.memory_space<smem>>
    %c2_i32_35 = arith.constant 2 : i32
    %c0_i32_36 = arith.constant 0 : i32
    %51 = tpu.memref_slice %arg2[%50, %c0_i32_36] : memref<40x16xf32, #tpu.memory_space<any>> -> memref<1x16xf32, #tpu.memory_space<any>>
    %c2_i32_37 = arith.constant 2 : i32
    %c0_i32_38 = arith.constant 0 : i32
    %52 = tpu.memref_slice %arg9[%c2_i32_37, %c0_i32_38] : memref<8x16xf32, #tpu.memory_space<vmem>> -> memref<1x16xf32, #tpu.memory_space<vmem>>
    %53 = tpu.memref_slice %arg10[%c2_i32_35] : memref<8x!tpu.dma_semaphore, #tpu.memory_space<semaphore_mem>> -> memref<1x!tpu.dma_semaphore, #tpu.memory_space<semaphore_mem>>
    %54 = tpu.memref_squeeze %53 : memref<1x!tpu.dma_semaphore, #tpu.memory_space<semaphore_mem>> -> memref<!tpu.dma_semaphore, #tpu.memory_space<semaphore_mem>>
    tpu.wait_dma2 semaphore(%54 : memref<!tpu.dma_semaphore, #tpu.memory_space<semaphore_mem>>) src(%51 : memref<1x16xf32, #tpu.memory_space<any>>) dst(%52 : memref<1x16xf32, #tpu.memory_space<vmem>>)
    %c3_39 = arith.constant 3 : index
    %55 = memref.load %arg1[%c3_39] : memref<8xi32, #tpu.memory_space<smem>>
    %c3_i32_40 = arith.constant 3 : i32
    %c0_i32_41 = arith.constant 0 : i32
    %56 = tpu.memref_slice %arg2[%55, %c0_i32_41] : memref<40x16xf32, #tpu.memory_space<any>> -> memref<1x16xf32, #tpu.memory_space<any>>
    %c3_i32_42 = arith.constant 3 : i32
    %c0_i32_43 = arith.constant 0 : i32
    %57 = tpu.memref_slice %arg9[%c3_i32_42, %c0_i32_43] : memref<8x16xf32, #tpu.memory_space<vmem>> -> memref<1x16xf32, #tpu.memory_space<vmem>>
    %58 = tpu.memref_slice %arg10[%c3_i32_40] : memref<8x!tpu.dma_semaphore, #tpu.memory_space<semaphore_mem>> -> memref<1x!tpu.dma_semaphore, #tpu.memory_space<semaphore_mem>>
    %59 = tpu.memref_squeeze %58 : memref<1x!tpu.dma_semaphore, #tpu.memory_space<semaphore_mem>> -> memref<!tpu.dma_semaphore, #tpu.memory_space<semaphore_mem>>
    tpu.wait_dma2 semaphore(%59 : memref<!tpu.dma_semaphore, #tpu.memory_space<semaphore_mem>>) src(%56 : memref<1x16xf32, #tpu.memory_space<any>>) dst(%57 : memref<1x16xf32, #tpu.memory_space<vmem>>)
    %c4_44 = arith.constant 4 : index
    %60 = memref.load %arg1[%c4_44] : memref<8xi32, #tpu.memory_space<smem>>
    %c4_i32_45 = arith.constant 4 : i32
    %c0_i32_46 = arith.constant 0 : i32
    %61 = tpu.memref_slice %arg2[%60, %c0_i32_46] : memref<40x16xf32, #tpu.memory_space<any>> -> memref<1x16xf32, #tpu.memory_space<any>>
    %c4_i32_47 = arith.constant 4 : i32
    %c0_i32_48 = arith.constant 0 : i32
    %62 = tpu.memref_slice %arg9[%c4_i32_47, %c0_i32_48] : memref<8x16xf32, #tpu.memory_space<vmem>> -> memref<1x16xf32, #tpu.memory_space<vmem>>
    %63 = tpu.memref_slice %arg10[%c4_i32_45] : memref<8x!tpu.dma_semaphore, #tpu.memory_space<semaphore_mem>> -> memref<1x!tpu.dma_semaphore, #tpu.memory_space<semaphore_mem>>
    %64 = tpu.memref_squeeze %63 : memref<1x!tpu.dma_semaphore, #tpu.memory_space<semaphore_mem>> -> memref<!tpu.dma_semaphore, #tpu.memory_space<semaphore_mem>>
    tpu.wait_dma2 semaphore(%64 : memref<!tpu.dma_semaphore, #tpu.memory_space<semaphore_mem>>) src(%61 : memref<1x16xf32, #tpu.memory_space<any>>) dst(%62 : memref<1x16xf32, #tpu.memory_space<vmem>>)
    %c5_49 = arith.constant 5 : index
    %65 = memref.load %arg1[%c5_49] : memref<8xi32, #tpu.memory_space<smem>>
    %c5_i32_50 = arith.constant 5 : i32
    %c0_i32_51 = arith.constant 0 : i32
    %66 = tpu.memref_slice %arg2[%65, %c0_i32_51] : memref<40x16xf32, #tpu.memory_space<any>> -> memref<1x16xf32, #tpu.memory_space<any>>
    %c5_i32_52 = arith.constant 5 : i32
    %c0_i32_53 = arith.constant 0 : i32
    %67 = tpu.memref_slice %arg9[%c5_i32_52, %c0_i32_53] : memref<8x16xf32, #tpu.memory_space<vmem>> -> memref<1x16xf32, #tpu.memory_space<vmem>>
    %68 = tpu.memref_slice %arg10[%c5_i32_50] : memref<8x!tpu.dma_semaphore, #tpu.memory_space<semaphore_mem>> -> memref<1x!tpu.dma_semaphore, #tpu.memory_space<semaphore_mem>>
    %69 = tpu.memref_squeeze %68 : memref<1x!tpu.dma_semaphore, #tpu.memory_space<semaphore_mem>> -> memref<!tpu.dma_semaphore, #tpu.memory_space<semaphore_mem>>
    tpu.wait_dma2 semaphore(%69 : memref<!tpu.dma_semaphore, #tpu.memory_space<semaphore_mem>>) src(%66 : memref<1x16xf32, #tpu.memory_space<any>>) dst(%67 : memref<1x16xf32, #tpu.memory_space<vmem>>)
    %c6_54 = arith.constant 6 : index
    %70 = memref.load %arg1[%c6_54] : memref<8xi32, #tpu.memory_space<smem>>
    %c6_i32_55 = arith.constant 6 : i32
    %c0_i32_56 = arith.constant 0 : i32
    %71 = tpu.memref_slice %arg2[%70, %c0_i32_56] : memref<40x16xf32, #tpu.memory_space<any>> -> memref<1x16xf32, #tpu.memory_space<any>>
    %c6_i32_57 = arith.constant 6 : i32
    %c0_i32_58 = arith.constant 0 : i32
    %72 = tpu.memref_slice %arg9[%c6_i32_57, %c0_i32_58] : memref<8x16xf32, #tpu.memory_space<vmem>> -> memref<1x16xf32, #tpu.memory_space<vmem>>
    %73 = tpu.memref_slice %arg10[%c6_i32_55] : memref<8x!tpu.dma_semaphore, #tpu.memory_space<semaphore_mem>> -> memref<1x!tpu.dma_semaphore, #tpu.memory_space<semaphore_mem>>
    %74 = tpu.memref_squeeze %73 : memref<1x!tpu.dma_semaphore, #tpu.memory_space<semaphore_mem>> -> memref<!tpu.dma_semaphore, #tpu.memory_space<semaphore_mem>>
    tpu.wait_dma2 semaphore(%74 : memref<!tpu.dma_semaphore, #tpu.memory_space<semaphore_mem>>) src(%71 : memref<1x16xf32, #tpu.memory_space<any>>) dst(%72 : memref<1x16xf32, #tpu.memory_space<vmem>>)
    %c7_59 = arith.constant 7 : index
    %75 = memref.load %arg1[%c7_59] : memref<8xi32, #tpu.memory_space<smem>>
    %c7_i32_60 = arith.constant 7 : i32
    %c0_i32_61 = arith.constant 0 : i32
    %76 = tpu.memref_slice %arg2[%75, %c0_i32_61] : memref<40x16xf32, #tpu.memory_space<any>> -> memref<1x16xf32, #tpu.memory_space<any>>
    %c7_i32_62 = arith.constant 7 : i32
    %c0_i32_63 = arith.constant 0 : i32
    %77 = tpu.memref_slice %arg9[%c7_i32_62, %c0_i32_63] : memref<8x16xf32, #tpu.memory_space<vmem>> -> memref<1x16xf32, #tpu.memory_space<vmem>>
    %78 = tpu.memref_slice %arg10[%c7_i32_60] : memref<8x!tpu.dma_semaphore, #tpu.memory_space<semaphore_mem>> -> memref<1x!tpu.dma_semaphore, #tpu.memory_space<semaphore_mem>>
    %79 = tpu.memref_squeeze %78 : memref<1x!tpu.dma_semaphore, #tpu.memory_space<semaphore_mem>> -> memref<!tpu.dma_semaphore, #tpu.memory_space<semaphore_mem>>
    tpu.wait_dma2 semaphore(%79 : memref<!tpu.dma_semaphore, #tpu.memory_space<semaphore_mem>>) src(%76 : memref<1x16xf32, #tpu.memory_space<any>>) dst(%77 : memref<1x16xf32, #tpu.memory_space<vmem>>)
    %c0_64 = arith.constant 0 : index
    %c0_65 = arith.constant 0 : index
    %80 = vector.load %arg9[%c0_64, %c0_65] : memref<8x16xf32, #tpu.memory_space<vmem>>, vector<8x16xf32>
    %c0_66 = arith.constant 0 : index
    %c0_67 = arith.constant 0 : index
    %81 = vector.load %arg3[%c0_66, %c0_67] : memref<8x128xf32, #tpu.memory_space<vmem>>, vector<8x128xf32>
    %c0_68 = arith.constant 0 : index
    %c0_69 = arith.constant 0 : index
    %82 = vector.load %arg4[%c0_68, %c0_69] : memref<16x384xf32, #tpu.memory_space<vmem>>, vector<16x384xf32>
    %cst = arith.constant dense<0.000000e+00> : vector<8x384xf32>
    %83 = tpu.matmul %80, %82, %cst {dimension_numbers = #tpu.dot_dimension_numbers<[1], [0], [0], [1], [0, 0, 1, 1], [], []>} : vector<8x16xf32>, vector<16x384xf32>, vector<8x384xf32> -> vector<8x384xf32>
    %c0_70 = arith.constant 0 : index
    %c0_71 = arith.constant 0 : index
    %84 = vector.load %arg6[%c0_70, %c0_71] : memref<1x384xf32, #tpu.memory_space<vmem>>, vector<1x384xf32>
    %85 = vector.broadcast %84 : vector<1x384xf32> to vector<8x384xf32>
    %86 = arith.addf %83, %85 : vector<8x384xf32>
    %c0_72 = arith.constant 0 : index
    %c0_73 = arith.constant 0 : index
    %87 = vector.load %arg5[%c0_72, %c0_73] : memref<128x384xf32, #tpu.memory_space<vmem>>, vector<128x384xf32>
    %cst_74 = arith.constant dense<0.000000e+00> : vector<8x384xf32>
    %88 = tpu.matmul %81, %87, %cst_74 {dimension_numbers = #tpu.dot_dimension_numbers<[1], [0], [0], [1], [0, 0, 1, 1], [], []>} : vector<8x128xf32>, vector<128x384xf32>, vector<8x384xf32> -> vector<8x384xf32>
    %c0_75 = arith.constant 0 : index
    %c0_76 = arith.constant 0 : index
    %89 = vector.load %arg7[%c0_75, %c0_76] : memref<1x384xf32, #tpu.memory_space<vmem>>, vector<1x384xf32>
    %90 = vector.broadcast %89 : vector<1x384xf32> to vector<8x384xf32>
    %91 = arith.addf %88, %90 : vector<8x384xf32>
    %92 = vector.extract_strided_slice %86 {offsets = [0, 0], sizes = [8, 128], strides = [1, 1]} : vector<8x384xf32> to vector<8x128xf32>
    %93 = vector.extract_strided_slice %91 {offsets = [0, 0], sizes = [8, 128], strides = [1, 1]} : vector<8x384xf32> to vector<8x128xf32>
    %94 = arith.addf %92, %93 : vector<8x128xf32>
    %95 = arith.negf %94 : vector<8x128xf32>
    %96 = math.exp %95 : vector<8x128xf32>
    %cst_77 = arith.constant 1.000000e+00 : f32
    %97 = vector.broadcast %cst_77 : f32 to vector<8x128xf32>
    %98 = arith.addf %97, %96 : vector<8x128xf32>
    %99 = arith.divf %97, %98 : vector<8x128xf32>
    %100 = vector.extract_strided_slice %86 {offsets = [0, 128], sizes = [8, 128], strides = [1, 1]} : vector<8x384xf32> to vector<8x128xf32>
    %101 = vector.extract_strided_slice %91 {offsets = [0, 128], sizes = [8, 128], strides = [1, 1]} : vector<8x384xf32> to vector<8x128xf32>
    %102 = arith.addf %100, %101 : vector<8x128xf32>
    %103 = arith.negf %102 : vector<8x128xf32>
    %104 = math.exp %103 : vector<8x128xf32>
    %cst_78 = arith.constant 1.000000e+00 : f32
    %105 = vector.broadcast %cst_78 : f32 to vector<8x128xf32>
    %106 = arith.addf %105, %104 : vector<8x128xf32>
    %107 = arith.divf %105, %106 : vector<8x128xf32>
    %108 = vector.extract_strided_slice %86 {offsets = [0, 256], sizes = [8, 128], strides = [1, 1]} : vector<8x384xf32> to vector<8x128xf32>
    %109 = vector.extract_strided_slice %91 {offsets = [0, 256], sizes = [8, 128], strides = [1, 1]} : vector<8x384xf32> to vector<8x128xf32>
    %110 = arith.mulf %99, %109 : vector<8x128xf32>
    %111 = arith.addf %108, %110 : vector<8x128xf32>
    %112 = math.tanh %111 : vector<8x128xf32>
    %cst_79 = arith.constant 1.000000e+00 : f32
    %113 = vector.broadcast %cst_79 : f32 to vector<8x128xf32>
    %114 = arith.subf %113, %107 : vector<8x128xf32>
    %115 = arith.mulf %114, %112 : vector<8x128xf32>
    %116 = arith.mulf %107, %81 : vector<8x128xf32>
    %117 = arith.addf %115, %116 : vector<8x128xf32>
    %c0_80 = arith.constant 0 : index
    %c0_81 = arith.constant 0 : index
    %118 = vector.load %arg8[%c0_80, %c0_81] : memref<8x128xf32, #tpu.memory_space<vmem>>, vector<8x128xf32>
    tpu.vector_store %arg8[%c0_80, %c0_81], %117 {strides = array<i32>} : memref<8x128xf32, #tpu.memory_space<vmem>>, vector<8x128xf32>,
    return
  }
  func.func @transform_1(%arg0: i32, %arg1: memref<8xi32, #tpu.memory_space<smem>>) -> (i32, i32) {
    %c0_i32 = arith.constant 0 : i32
    %c0_i32_0 = arith.constant 0 : i32
    %c0_i32_1 = arith.constant 0 : i32
    return %c0_i32, %c0_i32_0 : i32, i32
  }
  func.func @transform_2(%arg0: i32, %arg1: memref<8xi32, #tpu.memory_space<smem>>) -> (i32, i32) {
    %c0_i32 = arith.constant 0 : i32
    %c0_i32_0 = arith.constant 0 : i32
    %c0_i32_1 = arith.constant 0 : i32
    return %c0_i32, %c0_i32_0 : i32, i32
  }
  func.func @transform_3(%arg0: i32, %arg1: memref<8xi32, #tpu.memory_space<smem>>) -> (i32, i32) {
    %c0_i32 = arith.constant 0 : i32
    %c0_i32_0 = arith.constant 0 : i32
    %c0_i32_1 = arith.constant 0 : i32
    return %c0_i32, %c0_i32_0 : i32, i32
  }
  func.func @transform_4(%arg0: i32, %arg1: memref<8xi32, #tpu.memory_space<smem>>) -> (i32, i32) {
    %c0_i32 = arith.constant 0 : i32
    %c0_i32_0 = arith.constant 0 : i32
    %c0_i32_1 = arith.constant 0 : i32
    return %c0_i32, %c0_i32_0 : i32, i32
  }
  func.func @transform_5(%arg0: i32, %arg1: memref<8xi32, #tpu.memory_space<smem>>) -> (i32, i32) {
    %c0_i32 = arith.constant 0 : i32
    %c0_i32_0 = arith.constant 0 : i32
    %c0_i32_1 = arith.constant 0 : i32
    return %c0_i32, %c0_i32_0 : i32, i32
  }
  func.func @transform_6(%arg0: i32, %arg1: memref<8xi32, #tpu.memory_space<smem>>) -> (i32, i32) {
    %c0_i32 = arith.constant 0 : i32
    %c0_i32_0 = arith.constant 0 : i32
    %c0_i32_1 = arith.constant 0 : i32
    return %c0_i32, %c0_i32_0 : i32, i32
  }
}

</mosaic_0001>

<llo_original>
// kernel: encoder_rnn_forward.1
$region0: #{encoder_rnn_forward.1}
  #allocation0 [shape = 'u32[]', space=smem, size = 0x4, offset = 0x4, fixed_abs, tag = 'smem constant byte address 0x4 - core index']
  #allocation1 [shape = 'u32[144,128]{1,0:T(1,128)}', space=vmem, size = 0x12000, scoped, tag = 'internal scratch']
  #allocation2 [shape = 'f32[8,16]{1,0:T(8,128)}', space=vmem, size = 0x1000, scoped, tag = 'scratch operand']
  #allocation3 [shape = 's32[8]{0}', space=sflag, size = 0x20, scoped, tag = 'scratch operand']
  #allocation4 [shape = 's32[1]{0}', space=sflag, size = 0x4, scoped, tag = 'scoped memory for encoder_rnn_forward.1']
  #allocation5 [shape = 'u8[512]{0}', space=smem, size = 0x200, scoped, tag = 'prefetched SMEM operand 0']
  #allocation8 [shape = 's32[]', space=sflag, size = 0x4, offset = 0, fixed_abs, tag = 'sflag constant byte address 0x0 - dummy sync flag']
  #allocation9 [shape = 's32[]', space=sflag, size = 0x4, offset = 0, fixed_abs, tag = 'sflag constant byte address 0x0 - dummy sync flag']
  #allocation10 [shape = 's32[]', space=sflag, size = 0x4, offset = 0, fixed_abs, tag = 'sflag constant byte address 0x0 - dummy sync flag']
  #allocation11 [shape = 's32[]', space=sflag, size = 0x4, offset = 0, fixed_abs, tag = 'sflag constant byte address 0x0 - dummy sync flag']
  #allocation12 [shape = 's32[]', space=sflag, size = 0x4, offset = 0, fixed_abs, tag = 'sflag constant byte address 0x0 - dummy sync flag']
  #allocation13 [shape = 's32[]', space=sflag, size = 0x4, offset = 0, fixed_abs, tag = 'sflag constant byte address 0x0 - dummy sync flag']
  #allocation14 [shape = 's32[]', space=sflag, size = 0x4, offset = 0, fixed_abs, tag = 'sflag constant byte address 0x0 - dummy sync flag']
  #allocation15 [shape = 's32[]', space=sflag, size = 0x4, offset = 0, fixed_abs, tag = 'sflag constant byte address 0x0 - dummy sync flag']
  %s0 = inlined_call_operand.vmem [shape: s32[8], index: 0, kind: input, shape index: {}]
  %s1 = inlined_call_operand.vmem [shape: f32[40,16], index: 1, kind: input, shape index: {}]
  %s2 = inlined_call_operand.vmem [shape: f32[8,128], index: 2, kind: input, shape index: {}]
  %s3 = inlined_call_operand.vmem [shape: f32[16,384], index: 3, kind: input, shape index: {}]
  %s4 = inlined_call_operand.hbm [shape: f32[128,384], index: 4, kind: input, shape index: {}]
  %s5 = inlined_call_operand.vmem [shape: f32[1,384], index: 5, kind: input, shape index: {}]
  %s6 = inlined_call_operand.vmem [shape: f32[1,384], index: 6, kind: input, shape index: {}]
  %s7 = inlined_call_operand.vmem [shape: f32[8,128], index: 7, kind: output, shape index: {}]
  %s8 = sld [smem:[#allocation0]]
  $region274: #{encoder_rnn_forward.1} parent=0
    _
  %s10 = ssub.s32 1, %s8
  %s11 = scalar_select 0, %s10, %s8
  %s12 = sshll.u32 %s0, 4
  %s13 = int_to_ptr.vmem [resolvable:$true] %s12
  %15 = dma.vmem_to_smem %s13, 16, [#allocation5], [#allocation4]
  %16 = dma.done [#allocation4], 16
  %17 = sfence
  $region1: #{encoder_rnn_forward.1} parent=0
    #allocation6 [shape = 'u8[196608]{0}', space=vmem, size = 0x30000, scoped, tag = 'input window, operand 4, single buffered']
    #allocation7 [shape = 's32[1]{0}', space=sflag, size = 0x4, scoped, tag = 'scoped memory for encoder_rnn_forward.1']
    %18 = vsyncpa [#allocation7], 0
    // Predicated region
    $region2: #{encoder_rnn_forward.1} parent=1 // pred_check
      _
    $region3: #{encoder_rnn_forward.1} parent=1 // pred_check_branch
      %20 = sbr.rel (0) target = $region5
    $region4: #{encoder_rnn_forward.1} parent=1 // pred_region
      _
    $region5: #{encoder_rnn_forward.1} parent=1 // pred_fallthru
      _
    // Predicated region
    $region6: #{encoder_rnn_forward.1} parent=1 // pred_check
      _
    $region7: #{encoder_rnn_forward.1} parent=1 // pred_check_branch
      %22 = sbr.rel (0) target = $region9
    $region8: #{encoder_rnn_forward.1} parent=1 // pred_region
      _
    $region9: #{encoder_rnn_forward.1} parent=1 // pred_fallthru
      _
    // Predicated region
    $region10: #{encoder_rnn_forward.1} parent=1 // pred_check
      _
    $region11: #{encoder_rnn_forward.1} parent=1 // pred_check_branch
      %24 = sbr.rel (0) target = $region13
    $region12: #{encoder_rnn_forward.1} parent=1 // pred_region
      %s26 = ssub.s32 6144, 6144
      %27 = vsyncadd [#allocation7], %s26
      %s28 = sshll.u32 [#allocation6], 4
      %s29 = int_to_ptr.vmem [resolvable:$true] %s28
      %34 = dma.hbm_to_vmem [thread:$0]  %s4, 6144, %s29, [#allocation7], 384, 384, 24
    $region13: #{encoder_rnn_forward.1} parent=1 // pred_fallthru
      _
    // Predicated region
    $region14: #{encoder_rnn_forward.1} parent=1 // pred_check
      _
    $region15: #{encoder_rnn_forward.1} parent=1 // pred_check_branch
      %36 = sbr.rel (0) target = $region17
    $region16: #{encoder_rnn_forward.1} parent=1 // pred_region
      _
    $region17: #{encoder_rnn_forward.1} parent=1 // pred_fallthru
      _
    // Predicated region
    $region18: #{encoder_rnn_forward.1} parent=1 // pred_check
      _
    $region19: #{encoder_rnn_forward.1} parent=1 // pred_check_branch
      %38 = sbr.rel (0) target = $region21
    $region20: #{encoder_rnn_forward.1} parent=1 // pred_region
      _
    $region21: #{encoder_rnn_forward.1} parent=1 // pred_fallthru
      _
    // Predicated region
    $region22: #{encoder_rnn_forward.1} parent=1 // pred_check
      _
    $region23: #{encoder_rnn_forward.1} parent=1 // pred_check_branch
      %40 = sbr.rel (0) target = $region25
    $region24: #{encoder_rnn_forward.1} parent=1 // pred_region
      %41 = dma.done [#allocation7], 6144
    $region25: #{encoder_rnn_forward.1} parent=1 // pred_fallthru
      _
    %s42 = sld [smem:[#allocation5]]
    %s43 = scalar_lea.vmem %s1, %s42
    %p45 = scmp.lt.u32.totalorder 1, 8
    %p46 = pneg %p45
    // Predicated region
    $region26: #{encoder_rnn_forward.1} parent=1 // pred_check
      _
    $region27: #{encoder_rnn_forward.1} parent=1 // pred_check_branch
      %48 = sbr.rel (%p45) target = $region29
    $region28: #{encoder_rnn_forward.1} parent=1 // pred_region
      %s63 = sand.u32 1, 7
      %p64 = scmp.eq.s32.totalorder %s63, 0
      %p65 = pneg %p64
      // Predicated region
      $region41: #{encoder_rnn_forward.1} parent=28 // pred_check
        _
      $region42: #{encoder_rnn_forward.1} parent=28 // pred_check_branch
        %67 = sbr.rel (%p64) target = $region44
      $region43: #{encoder_rnn_forward.1} parent=28 // pred_region
        %s68 = sand.u32 1, 7
        %s69 = ssub.s32 1, %s68
        %s70 = scalar_lea.vmem %s43, %s69
        %s71 = ssub.s32 1, %s68
        %s72 = scalar_lea.vmem [#allocation2], %s71
        %s73 = sshllo.u32 0, %s68
        loop: start=0, step=1, limit=1
        $region45: #{encoder_rnn_forward.1} parent=43 // loop_pre_header
          _
        $region46: #{encoder_rnn_forward.1} parent=43 // loop_header
          %s75 = sphi 0, %s79
          %p76 = scmp.ge.s32.totalorder %s75, 1
          %s80 = sphi %s70, %s70
          %s81 = sphi %s72, %s72
        $region47: #{encoder_rnn_forward.1} parent=43 // loop_header_branch
          %78 = sbr.rel (%p76) target = $region51
        $region48: #{encoder_rnn_forward.1} parent=43 // loop_body
          %v82 = vld [vmem:[%s80] sm:%s73]
          %83 = vst [vmem:[%s81] sm:%s73] %v82
        $region49: #{encoder_rnn_forward.1} parent=43 // loop_footer
          %s79 = sadd.s32 1, %s75
        $region50: #{encoder_rnn_forward.1} parent=43 // loop_footer_branch
          %74 = sbr.rel target = $region46
        $region51: #{encoder_rnn_forward.1} parent=43 // loop_exit
          _
      $region44: #{encoder_rnn_forward.1} parent=28 // pred_fallthru
        _
    $region29: #{encoder_rnn_forward.1} parent=1 // pred_fallthru
      _
    // Predicated region
    $region30: #{encoder_rnn_forward.1} parent=1 // pred_check
      %p49 = pneg %p45
    $region31: #{encoder_rnn_forward.1} parent=1 // pred_check_branch
      %51 = sbr.rel (%p49) target = $region33
    $region32: #{encoder_rnn_forward.1} parent=1 // pred_region
      %s52 = sshllo.u32 0, 1
      loop: start=0, step=1, limit=1
      $region34: #{encoder_rnn_forward.1} parent=32 // loop_pre_header
        _
      $region35: #{encoder_rnn_forward.1} parent=32 // loop_header
        %s54 = sphi 0, %s58
        %p55 = scmp.ge.s32.totalorder %s54, 1
        %s59 = sphi %s43, %s43
        %s60 = sphi [#allocation2], [#allocation2]
      $region36: #{encoder_rnn_forward.1} parent=32 // loop_header_branch
        %57 = sbr.rel (%p55) target = $region40
      $region37: #{encoder_rnn_forward.1} parent=32 // loop_body
        %v61 = vld [vmem:[%s59] sm:%s52]
        %62 = vst [vmem:[%s60] sm:%s52] %v61
      $region38: #{encoder_rnn_forward.1} parent=32 // loop_footer
        %s58 = sadd.s32 1, %s54
      $region39: #{encoder_rnn_forward.1} parent=32 // loop_footer_branch
        %53 = sbr.rel target = $region35
      $region40: #{encoder_rnn_forward.1} parent=32 // loop_exit
        _
    $region33: #{encoder_rnn_forward.1} parent=1 // pred_fallthru
      _
    // Predicated region
    $region52: #{encoder_rnn_forward.1} parent=1 // pred_check
      _
    $region53: #{encoder_rnn_forward.1} parent=1 // pred_check_branch
      %86 = sbr.rel (0) target = $region55
    $region54: #{encoder_rnn_forward.1} parent=1 // pred_region
      %87 = vsyncadd [#allocation3], 16
    $region55: #{encoder_rnn_forward.1} parent=1 // pred_fallthru
      _
    %s88 = sld [smem:[#allocation5 + $0x1]]
    %s89 = scalar_lea.vmem %s1, %s88
    %s90 = scalar_lea.vmem [#allocation2], 1
    %s91 = scalar_lea.sflag [#allocation3], 1
    %p93 = scmp.lt.u32.totalorder 1, 8
    %p94 = pneg %p93
    // Predicated region
    $region56: #{encoder_rnn_forward.1} parent=1 // pred_check
      _
    $region57: #{encoder_rnn_forward.1} parent=1 // pred_check_branch
      %96 = sbr.rel (%p93) target = $region59
    $region58: #{encoder_rnn_forward.1} parent=1 // pred_region
      %s111 = sand.u32 1, 7
      %p112 = scmp.eq.s32.totalorder %s111, 0
      %p113 = pneg %p112
      // Predicated region
      $region71: #{encoder_rnn_forward.1} parent=58 // pred_check
        _
      $region72: #{encoder_rnn_forward.1} parent=58 // pred_check_branch
        %115 = sbr.rel (%p112) target = $region74
      $region73: #{encoder_rnn_forward.1} parent=58 // pred_region
        %s116 = sand.u32 1, 7
        %s117 = ssub.s32 1, %s116
        %s118 = scalar_lea.vmem %s89, %s117
        %s119 = ssub.s32 1, %s116
        %s120 = scalar_lea.vmem %s90, %s119 [#allocation2]
        %s121 = sshllo.u32 0, %s116
        loop: start=0, step=1, limit=1
        $region75: #{encoder_rnn_forward.1} parent=73 // loop_pre_header
          _
        $region76: #{encoder_rnn_forward.1} parent=73 // loop_header
          %s123 = sphi 0, %s127
          %p124 = scmp.ge.s32.totalorder %s123, 1
          %s128 = sphi %s118, %s118
          %s129 = sphi %s120, %s120
        $region77: #{encoder_rnn_forward.1} parent=73 // loop_header_branch
          %126 = sbr.rel (%p124) target = $region81
        $region78: #{encoder_rnn_forward.1} parent=73 // loop_body
          %v130 = vld [vmem:[%s128] sm:%s121]
          %131 = vst [vmem:[%s129] sm:%s121] %v130
        $region79: #{encoder_rnn_forward.1} parent=73 // loop_footer
          %s127 = sadd.s32 1, %s123
        $region80: #{encoder_rnn_forward.1} parent=73 // loop_footer_branch
          %122 = sbr.rel target = $region76
        $region81: #{encoder_rnn_forward.1} parent=73 // loop_exit
          _
      $region74: #{encoder_rnn_forward.1} parent=58 // pred_fallthru
        _
    $region59: #{encoder_rnn_forward.1} parent=1 // pred_fallthru
      _
    // Predicated region
    $region60: #{encoder_rnn_forward.1} parent=1 // pred_check
      %p97 = pneg %p93
    $region61: #{encoder_rnn_forward.1} parent=1 // pred_check_branch
      %99 = sbr.rel (%p97) target = $region63
    $region62: #{encoder_rnn_forward.1} parent=1 // pred_region
      %s100 = sshllo.u32 0, 1
      loop: start=0, step=1, limit=1
      $region64: #{encoder_rnn_forward.1} parent=62 // loop_pre_header
        _
      $region65: #{encoder_rnn_forward.1} parent=62 // loop_header
        %s102 = sphi 0, %s106
        %p103 = scmp.ge.s32.totalorder %s102, 1
        %s107 = sphi %s89, %s89
        %s108 = sphi %s90, %s90
      $region66: #{encoder_rnn_forward.1} parent=62 // loop_header_branch
        %105 = sbr.rel (%p103) target = $region70
      $region67: #{encoder_rnn_forward.1} parent=62 // loop_body
        %v109 = vld [vmem:[%s107] sm:%s100]
        %110 = vst [vmem:[%s108] sm:%s100] %v109
      $region68: #{encoder_rnn_forward.1} parent=62 // loop_footer
        %s106 = sadd.s32 1, %s102
      $region69: #{encoder_rnn_forward.1} parent=62 // loop_footer_branch
        %101 = sbr.rel target = $region65
      $region70: #{encoder_rnn_forward.1} parent=62 // loop_exit
        _
    $region63: #{encoder_rnn_forward.1} parent=1 // pred_fallthru
      _
    // Predicated region
    $region82: #{encoder_rnn_forward.1} parent=1 // pred_check
      _
    $region83: #{encoder_rnn_forward.1} parent=1 // pred_check_branch
      %134 = sbr.rel (0) target = $region85
    $region84: #{encoder_rnn_forward.1} parent=1 // pred_region
      %135 = vsyncadd %s91, 16
    $region85: #{encoder_rnn_forward.1} parent=1 // pred_fallthru
      _
    %s136 = sld [smem:[#allocation5 + $0x2]]
    %s137 = scalar_lea.vmem %s1, %s136
    %s138 = scalar_lea.vmem [#allocation2], 2
    %s139 = scalar_lea.sflag [#allocation3], 2
    %p141 = scmp.lt.u32.totalorder 1, 8
    %p142 = pneg %p141
    // Predicated region
    $region86: #{encoder_rnn_forward.1} parent=1 // pred_check
      _
    $region87: #{encoder_rnn_forward.1} parent=1 // pred_check_branch
      %144 = sbr.rel (%p141) target = $region89
    $region88: #{encoder_rnn_forward.1} parent=1 // pred_region
      %s159 = sand.u32 1, 7
      %p160 = scmp.eq.s32.totalorder %s159, 0
      %p161 = pneg %p160
      // Predicated region
      $region101: #{encoder_rnn_forward.1} parent=88 // pred_check
        _
      $region102: #{encoder_rnn_forward.1} parent=88 // pred_check_branch
        %163 = sbr.rel (%p160) target = $region104
      $region103: #{encoder_rnn_forward.1} parent=88 // pred_region
        %s164 = sand.u32 1, 7
        %s165 = ssub.s32 1, %s164
        %s166 = scalar_lea.vmem %s137, %s165
        %s167 = ssub.s32 1, %s164
        %s168 = scalar_lea.vmem %s138, %s167 [#allocation2]
        %s169 = sshllo.u32 0, %s164
        loop: start=0, step=1, limit=1
        $region105: #{encoder_rnn_forward.1} parent=103 // loop_pre_header
          _
        $region106: #{encoder_rnn_forward.1} parent=103 // loop_header
          %s171 = sphi 0, %s175
          %p172 = scmp.ge.s32.totalorder %s171, 1
          %s176 = sphi %s166, %s166
          %s177 = sphi %s168, %s168
        $region107: #{encoder_rnn_forward.1} parent=103 // loop_header_branch
          %174 = sbr.rel (%p172) target = $region111
        $region108: #{encoder_rnn_forward.1} parent=103 // loop_body
          %v178 = vld [vmem:[%s176] sm:%s169]
          %179 = vst [vmem:[%s177] sm:%s169] %v178
        $region109: #{encoder_rnn_forward.1} parent=103 // loop_footer
          %s175 = sadd.s32 1, %s171
        $region110: #{encoder_rnn_forward.1} parent=103 // loop_footer_branch
          %170 = sbr.rel target = $region106
        $region111: #{encoder_rnn_forward.1} parent=103 // loop_exit
          _
      $region104: #{encoder_rnn_forward.1} parent=88 // pred_fallthru
        _
    $region89: #{encoder_rnn_forward.1} parent=1 // pred_fallthru
      _
    // Predicated region
    $region90: #{encoder_rnn_forward.1} parent=1 // pred_check
      %p145 = pneg %p141
    $region91: #{encoder_rnn_forward.1} parent=1 // pred_check_branch
      %147 = sbr.rel (%p145) target = $region93
    $region92: #{encoder_rnn_forward.1} parent=1 // pred_region
      %s148 = sshllo.u32 0, 1
      loop: start=0, step=1, limit=1
      $region94: #{encoder_rnn_forward.1} parent=92 // loop_pre_header
        _
      $region95: #{encoder_rnn_forward.1} parent=92 // loop_header
        %s150 = sphi 0, %s154
        %p151 = scmp.ge.s32.totalorder %s150, 1
        %s155 = sphi %s137, %s137
        %s156 = sphi %s138, %s138
      $region96: #{encoder_rnn_forward.1} parent=92 // loop_header_branch
        %153 = sbr.rel (%p151) target = $region100
      $region97: #{encoder_rnn_forward.1} parent=92 // loop_body
        %v157 = vld [vmem:[%s155] sm:%s148]
        %158 = vst [vmem:[%s156] sm:%s148] %v157
      $region98: #{encoder_rnn_forward.1} parent=92 // loop_footer
        %s154 = sadd.s32 1, %s150
      $region99: #{encoder_rnn_forward.1} parent=92 // loop_footer_branch
        %149 = sbr.rel target = $region95
      $region100: #{encoder_rnn_forward.1} parent=92 // loop_exit
        _
    $region93: #{encoder_rnn_forward.1} parent=1 // pred_fallthru
      _
    // Predicated region
    $region112: #{encoder_rnn_forward.1} parent=1 // pred_check
      _
    $region113: #{encoder_rnn_forward.1} parent=1 // pred_check_branch
      %182 = sbr.rel (0) target = $region115
    $region114: #{encoder_rnn_forward.1} parent=1 // pred_region
      %183 = vsyncadd %s139, 16
    $region115: #{encoder_rnn_forward.1} parent=1 // pred_fallthru
      _
    %s184 = sld [smem:[#allocation5 + $0x3]]
    %s185 = scalar_lea.vmem %s1, %s184
    %s186 = scalar_lea.vmem [#allocation2], 3
    %s187 = scalar_lea.sflag [#allocation3], 3
    %p189 = scmp.lt.u32.totalorder 1, 8
    %p190 = pneg %p189
    // Predicated region
    $region116: #{encoder_rnn_forward.1} parent=1 // pred_check
      _
    $region117: #{encoder_rnn_forward.1} parent=1 // pred_check_branch
      %192 = sbr.rel (%p189) target = $region119
    $region118: #{encoder_rnn_forward.1} parent=1 // pred_region
      %s207 = sand.u32 1, 7
      %p208 = scmp.eq.s32.totalorder %s207, 0
      %p209 = pneg %p208
      // Predicated region
      $region131: #{encoder_rnn_forward.1} parent=118 // pred_check
        _
      $region132: #{encoder_rnn_forward.1} parent=118 // pred_check_branch
        %211 = sbr.rel (%p208) target = $region134
      $region133: #{encoder_rnn_forward.1} parent=118 // pred_region
        %s212 = sand.u32 1, 7
        %s213 = ssub.s32 1, %s212
        %s214 = scalar_lea.vmem %s185, %s213
        %s215 = ssub.s32 1, %s212
        %s216 = scalar_lea.vmem %s186, %s215 [#allocation2]
        %s217 = sshllo.u32 0, %s212
        loop: start=0, step=1, limit=1
        $region135: #{encoder_rnn_forward.1} parent=133 // loop_pre_header
          _
        $region136: #{encoder_rnn_forward.1} parent=133 // loop_header
          %s219 = sphi 0, %s223
          %p220 = scmp.ge.s32.totalorder %s219, 1
          %s224 = sphi %s214, %s214
          %s225 = sphi %s216, %s216
        $region137: #{encoder_rnn_forward.1} parent=133 // loop_header_branch
          %222 = sbr.rel (%p220) target = $region141
        $region138: #{encoder_rnn_forward.1} parent=133 // loop_body
          %v226 = vld [vmem:[%s224] sm:%s217]
          %227 = vst [vmem:[%s225] sm:%s217] %v226
        $region139: #{encoder_rnn_forward.1} parent=133 // loop_footer
          %s223 = sadd.s32 1, %s219
        $region140: #{encoder_rnn_forward.1} parent=133 // loop_footer_branch
          %218 = sbr.rel target = $region136
        $region141: #{encoder_rnn_forward.1} parent=133 // loop_exit
          _
      $region134: #{encoder_rnn_forward.1} parent=118 // pred_fallthru
        _
    $region119: #{encoder_rnn_forward.1} parent=1 // pred_fallthru
      _
    // Predicated region
    $region120: #{encoder_rnn_forward.1} parent=1 // pred_check
      %p193 = pneg %p189
    $region121: #{encoder_rnn_forward.1} parent=1 // pred_check_branch
      %195 = sbr.rel (%p193) target = $region123
    $region122: #{encoder_rnn_forward.1} parent=1 // pred_region
      %s196 = sshllo.u32 0, 1
      loop: start=0, step=1, limit=1
      $region124: #{encoder_rnn_forward.1} parent=122 // loop_pre_header
        _
      $region125: #{encoder_rnn_forward.1} parent=122 // loop_header
        %s198 = sphi 0, %s202
        %p199 = scmp.ge.s32.totalorder %s198, 1
        %s203 = sphi %s185, %s185
        %s204 = sphi %s186, %s186
      $region126: #{encoder_rnn_forward.1} parent=122 // loop_header_branch
        %201 = sbr.rel (%p199) target = $region130
      $region127: #{encoder_rnn_forward.1} parent=122 // loop_body
        %v205 = vld [vmem:[%s203] sm:%s196]
        %206 = vst [vmem:[%s204] sm:%s196] %v205
      $region128: #{encoder_rnn_forward.1} parent=122 // loop_footer
        %s202 = sadd.s32 1, %s198
      $region129: #{encoder_rnn_forward.1} parent=122 // loop_footer_branch
        %197 = sbr.rel target = $region125
      $region130: #{encoder_rnn_forward.1} parent=122 // loop_exit
        _
    $region123: #{encoder_rnn_forward.1} parent=1 // pred_fallthru
      _
    // Predicated region
    $region142: #{encoder_rnn_forward.1} parent=1 // pred_check
      _
    $region143: #{encoder_rnn_forward.1} parent=1 // pred_check_branch
      %230 = sbr.rel (0) target = $region145
    $region144: #{encoder_rnn_forward.1} parent=1 // pred_region
      %231 = vsyncadd %s187, 16
    $region145: #{encoder_rnn_forward.1} parent=1 // pred_fallthru
      _
    %s232 = sld [smem:[#allocation5 + $0x4]]
    %s233 = scalar_lea.vmem %s1, %s232
    %s234 = scalar_lea.vmem [#allocation2], 4
    %s235 = scalar_lea.sflag [#allocation3], 4
    %p237 = scmp.lt.u32.totalorder 1, 8
    %p238 = pneg %p237
    // Predicated region
    $region146: #{encoder_rnn_forward.1} parent=1 // pred_check
      _
    $region147: #{encoder_rnn_forward.1} parent=1 // pred_check_branch
      %240 = sbr.rel (%p237) target = $region149
    $region148: #{encoder_rnn_forward.1} parent=1 // pred_region
      %s255 = sand.u32 1, 7
      %p256 = scmp.eq.s32.totalorder %s255, 0
      %p257 = pneg %p256
      // Predicated region
      $region161: #{encoder_rnn_forward.1} parent=148 // pred_check
        _
      $region162: #{encoder_rnn_forward.1} parent=148 // pred_check_branch
        %259 = sbr.rel (%p256) target = $region164
      $region163: #{encoder_rnn_forward.1} parent=148 // pred_region
        %s260 = sand.u32 1, 7
        %s261 = ssub.s32 1, %s260
        %s262 = scalar_lea.vmem %s233, %s261
        %s263 = ssub.s32 1, %s260
        %s264 = scalar_lea.vmem %s234, %s263 [#allocation2]
        %s265 = sshllo.u32 0, %s260
        loop: start=0, step=1, limit=1
        $region165: #{encoder_rnn_forward.1} parent=163 // loop_pre_header
          _
        $region166: #{encoder_rnn_forward.1} parent=163 // loop_header
          %s267 = sphi 0, %s271
          %p268 = scmp.ge.s32.totalorder %s267, 1
          %s272 = sphi %s262, %s262
          %s273 = sphi %s264, %s264
        $region167: #{encoder_rnn_forward.1} parent=163 // loop_header_branch
          %270 = sbr.rel (%p268) target = $region171
        $region168: #{encoder_rnn_forward.1} parent=163 // loop_body
          %v274 = vld [vmem:[%s272] sm:%s265]
          %275 = vst [vmem:[%s273] sm:%s265] %v274
        $region169: #{encoder_rnn_forward.1} parent=163 // loop_footer
          %s271 = sadd.s32 1, %s267
        $region170: #{encoder_rnn_forward.1} parent=163 // loop_footer_branch
          %266 = sbr.rel target = $region166
        $region171: #{encoder_rnn_forward.1} parent=163 // loop_exit
          _
      $region164: #{encoder_rnn_forward.1} parent=148 // pred_fallthru
        _
    $region149: #{encoder_rnn_forward.1} parent=1 // pred_fallthru
      _
    // Predicated region
    $region150: #{encoder_rnn_forward.1} parent=1 // pred_check
      %p241 = pneg %p237
    $region151: #{encoder_rnn_forward.1} parent=1 // pred_check_branch
      %243 = sbr.rel (%p241) target = $region153
    $region152: #{encoder_rnn_forward.1} parent=1 // pred_region
      %s244 = sshllo.u32 0, 1
      loop: start=0, step=1, limit=1
      $region154: #{encoder_rnn_forward.1} parent=152 // loop_pre_header
        _
      $region155: #{encoder_rnn_forward.1} parent=152 // loop_header
        %s246 = sphi 0, %s250
        %p247 = scmp.ge.s32.totalorder %s246, 1
        %s251 = sphi %s233, %s233
        %s252 = sphi %s234, %s234
      $region156: #{encoder_rnn_forward.1} parent=152 // loop_header_branch
        %249 = sbr.rel (%p247) target = $region160
      $region157: #{encoder_rnn_forward.1} parent=152 // loop_body
        %v253 = vld [vmem:[%s251] sm:%s244]
        %254 = vst [vmem:[%s252] sm:%s244] %v253
      $region158: #{encoder_rnn_forward.1} parent=152 // loop_footer
        %s250 = sadd.s32 1, %s246
      $region159: #{encoder_rnn_forward.1} parent=152 // loop_footer_branch
        %245 = sbr.rel target = $region155
      $region160: #{encoder_rnn_forward.1} parent=152 // loop_exit
        _
    $region153: #{encoder_rnn_forward.1} parent=1 // pred_fallthru
      _
    // Predicated region
    $region172: #{encoder_rnn_forward.1} parent=1 // pred_check
      _
    $region173: #{encoder_rnn_forward.1} parent=1 // pred_check_branch
      %278 = sbr.rel (0) target = $region175
    $region174: #{encoder_rnn_forward.1} parent=1 // pred_region
      %279 = vsyncadd %s235, 16
    $region175: #{encoder_rnn_forward.1} parent=1 // pred_fallthru
      _
    %s280 = sld [smem:[#allocation5 + $0x5]]
    %s281 = scalar_lea.vmem %s1, %s280
    %s282 = scalar_lea.vmem [#allocation2], 5
    %s283 = scalar_lea.sflag [#allocation3], 5
    %p285 = scmp.lt.u32.totalorder 1, 8
    %p286 = pneg %p285
    // Predicated region
    $region176: #{encoder_rnn_forward.1} parent=1 // pred_check
      _
    $region177: #{encoder_rnn_forward.1} parent=1 // pred_check_branch
      %288 = sbr.rel (%p285) target = $region179
    $region178: #{encoder_rnn_forward.1} parent=1 // pred_region
      %s303 = sand.u32 1, 7
      %p304 = scmp.eq.s32.totalorder %s303, 0
      %p305 = pneg %p304
      // Predicated region
      $region191: #{encoder_rnn_forward.1} parent=178 // pred_check
        _
      $region192: #{encoder_rnn_forward.1} parent=178 // pred_check_branch
        %307 = sbr.rel (%p304) target = $region194
      $region193: #{encoder_rnn_forward.1} parent=178 // pred_region
        %s308 = sand.u32 1, 7
        %s309 = ssub.s32 1, %s308
        %s310 = scalar_lea.vmem %s281, %s309
        %s311 = ssub.s32 1, %s308
        %s312 = scalar_lea.vmem %s282, %s311 [#allocation2]
        %s313 = sshllo.u32 0, %s308
        loop: start=0, step=1, limit=1
        $region195: #{encoder_rnn_forward.1} parent=193 // loop_pre_header
          _
        $region196: #{encoder_rnn_forward.1} parent=193 // loop_header
          %s315 = sphi 0, %s319
          %p316 = scmp.ge.s32.totalorder %s315, 1
          %s320 = sphi %s310, %s310
          %s321 = sphi %s312, %s312
        $region197: #{encoder_rnn_forward.1} parent=193 // loop_header_branch
          %318 = sbr.rel (%p316) target = $region201
        $region198: #{encoder_rnn_forward.1} parent=193 // loop_body
          %v322 = vld [vmem:[%s320] sm:%s313]
          %323 = vst [vmem:[%s321] sm:%s313] %v322
        $region199: #{encoder_rnn_forward.1} parent=193 // loop_footer
          %s319 = sadd.s32 1, %s315
        $region200: #{encoder_rnn_forward.1} parent=193 // loop_footer_branch
          %314 = sbr.rel target = $region196
        $region201: #{encoder_rnn_forward.1} parent=193 // loop_exit
          _
      $region194: #{encoder_rnn_forward.1} parent=178 // pred_fallthru
        _
    $region179: #{encoder_rnn_forward.1} parent=1 // pred_fallthru
      _
    // Predicated region
    $region180: #{encoder_rnn_forward.1} parent=1 // pred_check
      %p289 = pneg %p285
    $region181: #{encoder_rnn_forward.1} parent=1 // pred_check_branch
      %291 = sbr.rel (%p289) target = $region183
    $region182: #{encoder_rnn_forward.1} parent=1 // pred_region
      %s292 = sshllo.u32 0, 1
      loop: start=0, step=1, limit=1
      $region184: #{encoder_rnn_forward.1} parent=182 // loop_pre_header
        _
      $region185: #{encoder_rnn_forward.1} parent=182 // loop_header
        %s294 = sphi 0, %s298
        %p295 = scmp.ge.s32.totalorder %s294, 1
        %s299 = sphi %s281, %s281
        %s300 = sphi %s282, %s282
      $region186: #{encoder_rnn_forward.1} parent=182 // loop_header_branch
        %297 = sbr.rel (%p295) target = $region190
      $region187: #{encoder_rnn_forward.1} parent=182 // loop_body
        %v301 = vld [vmem:[%s299] sm:%s292]
        %302 = vst [vmem:[%s300] sm:%s292] %v301
      $region188: #{encoder_rnn_forward.1} parent=182 // loop_footer
        %s298 = sadd.s32 1, %s294
      $region189: #{encoder_rnn_forward.1} parent=182 // loop_footer_branch
        %293 = sbr.rel target = $region185
      $region190: #{encoder_rnn_forward.1} parent=182 // loop_exit
        _
    $region183: #{encoder_rnn_forward.1} parent=1 // pred_fallthru
      _
    // Predicated region
    $region202: #{encoder_rnn_forward.1} parent=1 // pred_check
      _
    $region203: #{encoder_rnn_forward.1} parent=1 // pred_check_branch
      %326 = sbr.rel (0) target = $region205
    $region204: #{encoder_rnn_forward.1} parent=1 // pred_region
      %327 = vsyncadd %s283, 16
    $region205: #{encoder_rnn_forward.1} parent=1 // pred_fallthru
      _
    %s328 = sld [smem:[#allocation5 + $0x6]]
    %s329 = scalar_lea.vmem %s1, %s328
    %s330 = scalar_lea.vmem [#allocation2], 6
    %s331 = scalar_lea.sflag [#allocation3], 6
    %p333 = scmp.lt.u32.totalorder 1, 8
    %p334 = pneg %p333
    // Predicated region
    $region206: #{encoder_rnn_forward.1} parent=1 // pred_check
      _
    $region207: #{encoder_rnn_forward.1} parent=1 // pred_check_branch
      %336 = sbr.rel (%p333) target = $region209
    $region208: #{encoder_rnn_forward.1} parent=1 // pred_region
      %s351 = sand.u32 1, 7
      %p352 = scmp.eq.s32.totalorder %s351, 0
      %p353 = pneg %p352
      // Predicated region
      $region221: #{encoder_rnn_forward.1} parent=208 // pred_check
        _
      $region222: #{encoder_rnn_forward.1} parent=208 // pred_check_branch
        %355 = sbr.rel (%p352) target = $region224
      $region223: #{encoder_rnn_forward.1} parent=208 // pred_region
        %s356 = sand.u32 1, 7
        %s357 = ssub.s32 1, %s356
        %s358 = scalar_lea.vmem %s329, %s357
        %s359 = ssub.s32 1, %s356
        %s360 = scalar_lea.vmem %s330, %s359 [#allocation2]
        %s361 = sshllo.u32 0, %s356
        loop: start=0, step=1, limit=1
        $region225: #{encoder_rnn_forward.1} parent=223 // loop_pre_header
          _
        $region226: #{encoder_rnn_forward.1} parent=223 // loop_header
          %s363 = sphi 0, %s367
          %p364 = scmp.ge.s32.totalorder %s363, 1
          %s368 = sphi %s358, %s358
          %s369 = sphi %s360, %s360
        $region227: #{encoder_rnn_forward.1} parent=223 // loop_header_branch
          %366 = sbr.rel (%p364) target = $region231
        $region228: #{encoder_rnn_forward.1} parent=223 // loop_body
          %v370 = vld [vmem:[%s368] sm:%s361]
          %371 = vst [vmem:[%s369] sm:%s361] %v370
        $region229: #{encoder_rnn_forward.1} parent=223 // loop_footer
          %s367 = sadd.s32 1, %s363
        $region230: #{encoder_rnn_forward.1} parent=223 // loop_footer_branch
          %362 = sbr.rel target = $region226
        $region231: #{encoder_rnn_forward.1} parent=223 // loop_exit
          _
      $region224: #{encoder_rnn_forward.1} parent=208 // pred_fallthru
        _
    $region209: #{encoder_rnn_forward.1} parent=1 // pred_fallthru
      _
    // Predicated region
    $region210: #{encoder_rnn_forward.1} parent=1 // pred_check
      %p337 = pneg %p333
    $region211: #{encoder_rnn_forward.1} parent=1 // pred_check_branch
      %339 = sbr.rel (%p337) target = $region213
    $region212: #{encoder_rnn_forward.1} parent=1 // pred_region
      %s340 = sshllo.u32 0, 1
      loop: start=0, step=1, limit=1
      $region214: #{encoder_rnn_forward.1} parent=212 // loop_pre_header
        _
      $region215: #{encoder_rnn_forward.1} parent=212 // loop_header
        %s342 = sphi 0, %s346
        %p343 = scmp.ge.s32.totalorder %s342, 1
        %s347 = sphi %s329, %s329
        %s348 = sphi %s330, %s330
      $region216: #{encoder_rnn_forward.1} parent=212 // loop_header_branch
        %345 = sbr.rel (%p343) target = $region220
      $region217: #{encoder_rnn_forward.1} parent=212 // loop_body
        %v349 = vld [vmem:[%s347] sm:%s340]
        %350 = vst [vmem:[%s348] sm:%s340] %v349
      $region218: #{encoder_rnn_forward.1} parent=212 // loop_footer
        %s346 = sadd.s32 1, %s342
      $region219: #{encoder_rnn_forward.1} parent=212 // loop_footer_branch
        %341 = sbr.rel target = $region215
      $region220: #{encoder_rnn_forward.1} parent=212 // loop_exit
        _
    $region213: #{encoder_rnn_forward.1} parent=1 // pred_fallthru
      _
    // Predicated region
    $region232: #{encoder_rnn_forward.1} parent=1 // pred_check
      _
    $region233: #{encoder_rnn_forward.1} parent=1 // pred_check_branch
      %374 = sbr.rel (0) target = $region235
    $region234: #{encoder_rnn_forward.1} parent=1 // pred_region
      %375 = vsyncadd %s331, 16
    $region235: #{encoder_rnn_forward.1} parent=1 // pred_fallthru
      _
    %s376 = sld [smem:[#allocation5 + $0x7]]
    %s377 = scalar_lea.vmem %s1, %s376
    %s378 = scalar_lea.vmem [#allocation2], 7
    %s379 = scalar_lea.sflag [#allocation3], 7
    %p381 = scmp.lt.u32.totalorder 1, 8
    %p382 = pneg %p381
    // Predicated region
    $region236: #{encoder_rnn_forward.1} parent=1 // pred_check
      _
    $region237: #{encoder_rnn_forward.1} parent=1 // pred_check_branch
      %384 = sbr.rel (%p381) target = $region239
    $region238: #{encoder_rnn_forward.1} parent=1 // pred_region
      %s399 = sand.u32 1, 7
      %p400 = scmp.eq.s32.totalorder %s399, 0
      %p401 = pneg %p400
      // Predicated region
      $region251: #{encoder_rnn_forward.1} parent=238 // pred_check
        _
      $region252: #{encoder_rnn_forward.1} parent=238 // pred_check_branch
        %403 = sbr.rel (%p400) target = $region254
      $region253: #{encoder_rnn_forward.1} parent=238 // pred_region
        %s404 = sand.u32 1, 7
        %s405 = ssub.s32 1, %s404
        %s406 = scalar_lea.vmem %s377, %s405
        %s407 = ssub.s32 1, %s404
        %s408 = scalar_lea.vmem %s378, %s407 [#allocation2]
        %s409 = sshllo.u32 0, %s404
        loop: start=0, step=1, limit=1
        $region255: #{encoder_rnn_forward.1} parent=253 // loop_pre_header
          _
        $region256: #{encoder_rnn_forward.1} parent=253 // loop_header
          %s411 = sphi 0, %s415
          %p412 = scmp.ge.s32.totalorder %s411, 1
          %s416 = sphi %s406, %s406
          %s417 = sphi %s408, %s408
        $region257: #{encoder_rnn_forward.1} parent=253 // loop_header_branch
          %414 = sbr.rel (%p412) target = $region261
        $region258: #{encoder_rnn_forward.1} parent=253 // loop_body
          %v418 = vld [vmem:[%s416] sm:%s409]
          %419 = vst [vmem:[%s417] sm:%s409] %v418
        $region259: #{encoder_rnn_forward.1} parent=253 // loop_footer
          %s415 = sadd.s32 1, %s411
        $region260: #{encoder_rnn_forward.1} parent=253 // loop_footer_branch
          %410 = sbr.rel target = $region256
        $region261: #{encoder_rnn_forward.1} parent=253 // loop_exit
          _
      $region254: #{encoder_rnn_forward.1} parent=238 // pred_fallthru
        _
    $region239: #{encoder_rnn_forward.1} parent=1 // pred_fallthru
      _
    // Predicated region
    $region240: #{encoder_rnn_forward.1} parent=1 // pred_check
      %p385 = pneg %p381
    $region241: #{encoder_rnn_forward.1} parent=1 // pred_check_branch
      %387 = sbr.rel (%p385) target = $region243
    $region242: #{encoder_rnn_forward.1} parent=1 // pred_region
      %s388 = sshllo.u32 0, 1
      loop: start=0, step=1, limit=1
      $region244: #{encoder_rnn_forward.1} parent=242 // loop_pre_header
        _
      $region245: #{encoder_rnn_forward.1} parent=242 // loop_header
        %s390 = sphi 0, %s394
        %p391 = scmp.ge.s32.totalorder %s390, 1
        %s395 = sphi %s377, %s377
        %s396 = sphi %s378, %s378
      $region246: #{encoder_rnn_forward.1} parent=242 // loop_header_branch
        %393 = sbr.rel (%p391) target = $region250
      $region247: #{encoder_rnn_forward.1} parent=242 // loop_body
        %v397 = vld [vmem:[%s395] sm:%s388]
        %398 = vst [vmem:[%s396] sm:%s388] %v397
      $region248: #{encoder_rnn_forward.1} parent=242 // loop_footer
        %s394 = sadd.s32 1, %s390
      $region249: #{encoder_rnn_forward.1} parent=242 // loop_footer_branch
        %389 = sbr.rel target = $region245
      $region250: #{encoder_rnn_forward.1} parent=242 // loop_exit
        _
    $region243: #{encoder_rnn_forward.1} parent=1 // pred_fallthru
      _
    // Predicated region
    $region262: #{encoder_rnn_forward.1} parent=1 // pred_check
      _
    $region263: #{encoder_rnn_forward.1} parent=1 // pred_check_branch
      %422 = sbr.rel (0) target = $region265
    $region264: #{encoder_rnn_forward.1} parent=1 // pred_region
      %423 = vsyncadd %s379, 16
    $region265: #{encoder_rnn_forward.1} parent=1 // pred_fallthru
      _
    %s424 = sld [smem:[#allocation5]]
    %s425 = smul.u32 1, 1
    %s426 = sshll.u32 %s425, 4
    %427 = dma.done [#allocation3], %s426
    %s428 = sld [smem:[#allocation5 + $0x1]]
    %s429 = sshll.u32 %s425, 4
    %430 = dma.done %s91, %s429
    %s431 = sld [smem:[#allocation5 + $0x2]]
    %s432 = sshll.u32 %s425, 4
    %433 = dma.done %s139, %s432
    %s434 = sld [smem:[#allocation5 + $0x3]]
    %s435 = sshll.u32 %s425, 4
    %436 = dma.done %s187, %s435
    %s437 = sld [smem:[#allocation5 + $0x4]]
    %s438 = sshll.u32 %s425, 4
    %439 = dma.done %s235, %s438
    %s440 = sld [smem:[#allocation5 + $0x5]]
    %s441 = sshll.u32 %s425, 4
    %442 = dma.done %s283, %s441
    %s443 = sld [smem:[#allocation5 + $0x6]]
    %s444 = sshll.u32 %s425, 4
    %445 = dma.done %s331, %s444
    %s446 = sld [smem:[#allocation5 + $0x7]]
    %s447 = sshll.u32 %s425, 4
    %448 = dma.done %s379, %s447
    %v449 = vld [vmem:[#allocation2] sm:$0xff]
    %v450 = vld [vmem:[%s2] sm:$0xff]
    %v451 = vld [vmem:[%s3] sm:$0xff]
    %v452 = vld [vmem:[%s3 + $0x8] sm:$0xff]
    %v453 = vld [vmem:[%s3 + $0x10] sm:$0xff]
    %v454 = vld [vmem:[%s3 + $0x18] sm:$0xff]
    %v455 = vld [vmem:[%s3 + $0x20] sm:$0xff]
    %v456 = vld [vmem:[%s3 + $0x28] sm:$0xff]
    %v457 = vld [vmem:[%s5] sm:$0x7]
    %v459 = vlaneseq
    %v460 = vshrl.u32 %v459, 7
    %v461 = vsub.s32 0, %v460
    %v462 = vrot.slane %v457, %v461
    %v463 = vlaneseq
    %v464 = vshrl.u32 %v463, 7
    %v465 = vsub.s32 1, %v464
    %v466 = vrot.slane %v457, %v465
    %v467 = vlaneseq
    %v468 = vshrl.u32 %v467, 7
    %v469 = vsub.s32 2, %v468
    %v470 = vrot.slane %v457, %v469
    %vm474 = vcmask 130048
    %v476 = vsel %vm474, %v449, 0
    %478 = vmatprep.subr.mxu0 %v452
    %479 = vmatpush1.msra.mxu0 %v451
    %480 = vmatprep.subr.mxu0 %v455
    %481 = vmatpush1.msra.mxu0 %v454
    %482 = vmatprep.subr.mxu0 0.0
    %483 = vmatpush1.msra.mxu0 0.0
    %484 = vmatprep.subr.mxu0 0.0
    %485 = vmatpush1.msra.mxu0 0.0
    %486 = vmatprep.subr.mxu0 0.0
    %487 = vmatpush1.msra.mxu0 0.0
    %488 = vmatprep.subr.mxu0 0.0
    %489 = vmatpush1.msra.mxu0 0.0
    %490 = vmatprep.subr.mxu0 0.0
    %491 = vmatpush1.msra.mxu0 0.0
    %492 = vmatprep.subr.mxu0 0.0
    %493 = vmatpush1.msra.mxu0 0.0
    %494 = vmatprep.subr.mxu0 0.0
    %495 = vmatpush1.msra.mxu0 0.0
    %496 = vmatprep.subr.mxu0 0.0
    %497 = vmatpush1.msra.mxu0 0.0
    %498 = vmatprep.subr.mxu0 0.0
    %499 = vmatpush1.msra.mxu0 0.0
    %500 = vmatprep.subr.mxu0 0.0
    %501 = vmatpush1.msra.mxu0 0.0
    %502 = vmatprep.subr.mxu0 0.0
    %503 = vmatpush1.msra.mxu0 0.0
    %504 = vmatprep.subr.mxu0 0.0
    %505 = vmatpush1.msra.mxu0 0.0
    %506 = vmatprep.subr.mxu0 0.0
    %507 = vmatpush1.msra.mxu0 0.0
    %508 = vmatprep.subr.mxu0 0.0
    %509 = vmatpush1.msra.mxu0 0.0
    %510 = vmatprep.subr.mxu0 0.0
    %511 = vmatpush1.msra.mxu0 0.0
    %512 = vmatprep.subr.mxu0 0.0
    %513 = vmatpush1.msra.mxu0 0.0
    %514 = vmatprep.subr.mxu0 0.0
    %515 = vmatpush1.msra.mxu0 0.0
    %516 = vmatprep.subr.mxu0 0.0
    %517 = vmatpush1.msra.mxu0 0.0
    %518 = vmatprep.subr.mxu0 0.0
    %519 = vmatpush1.msra.mxu0 0.0
    %520 = vmatprep.subr.mxu0 0.0
    %521 = vmatpush1.msra.mxu0 0.0
    %522 = vmatprep.subr.mxu0 0.0
    %523 = vmatpush1.msra.mxu0 0.0
    %524 = vmatprep.subr.mxu0 0.0
    %525 = vmatpush1.msra.mxu0 0.0
    %526 = vmatprep.subr.mxu0 0.0
    %527 = vmatpush1.msra.mxu0 0.0
    %528 = vmatprep.subr.mxu0 0.0
    %529 = vmatpush1.msra.mxu0 0.0
    %530 = vmatprep.subr.mxu0 0.0
    %531 = vmatpush1.msra.mxu0 0.0
    %532 = vmatprep.subr.mxu0 0.0
    %533 = vmatpush1.msra.mxu0 0.0
    %534 = vmatprep.subr.mxu0 0.0
    %535 = vmatpush1.msra.mxu0 0.0
    %536 = vmatprep.subr.mxu0 0.0
    %537 = vmatpush1.msra.mxu0 0.0
    %538 = vmatprep.subr.mxu0 0.0
    %539 = vmatpush1.msra.mxu0 0.0
    %540 = vmatprep.subr.mxu0 0.0
    %541 = vmatpush1.msra.mxu0 0.0
    %542 = vmatprep.mubr.f32.mxu0 0.0
    %543 = vmatmul.mubr.f32.gmra.mrb[0].mxu0 %v476
    %v544 = vpop.f32.mrb[0].mxu0
    %v545 = vadd.f32 %v462, %v544
    %v546 = vpop.f32.mrb[0].mxu0
    %v547 = vadd.f32 %v466, %v546
    %548 = vdwg.mxu0
    %549 = vmatprep.subr.mxu0 0.0
    %550 = vmatpush1.msra.mxu0 %v453
    %551 = vmatprep.subr.mxu0 0.0
    %552 = vmatpush1.msra.mxu0 %v456
    %553 = vmatprep.subr.mxu0 0.0
    %554 = vmatpush1.msra.mxu0 0.0
    %555 = vmatprep.subr.mxu0 0.0
    %556 = vmatpush1.msra.mxu0 0.0
    %557 = vmatprep.subr.mxu0 0.0
    %558 = vmatpush1.msra.mxu0 0.0
    %559 = vmatprep.subr.mxu0 0.0
    %560 = vmatpush1.msra.mxu0 0.0
    %561 = vmatprep.subr.mxu0 0.0
    %562 = vmatpush1.msra.mxu0 0.0
    %563 = vmatprep.subr.mxu0 0.0
    %564 = vmatpush1.msra.mxu0 0.0
    %565 = vmatprep.subr.mxu0 0.0
    %566 = vmatpush1.msra.mxu0 0.0
    %567 = vmatprep.subr.mxu0 0.0
    %568 = vmatpush1.msra.mxu0 0.0
    %569 = vmatprep.subr.mxu0 0.0
    %570 = vmatpush1.msra.mxu0 0.0
    %571 = vmatprep.subr.mxu0 0.0
    %572 = vmatpush1.msra.mxu0 0.0
    %573 = vmatprep.subr.mxu0 0.0
    %574 = vmatpush1.msra.mxu0 0.0
    %575 = vmatprep.subr.mxu0 0.0
    %576 = vmatpush1.msra.mxu0 0.0
    %577 = vmatprep.subr.mxu0 0.0
    %578 = vmatpush1.msra.mxu0 0.0
    %579 = vmatprep.subr.mxu0 0.0
    %580 = vmatpush1.msra.mxu0 0.0
    %581 = vmatprep.subr.mxu0 0.0
    %582 = vmatpush1.msra.mxu0 0.0
    %583 = vmatprep.subr.mxu0 0.0
    %584 = vmatpush1.msra.mxu0 0.0
    %585 = vmatprep.subr.mxu0 0.0
    %586 = vmatpush1.msra.mxu0 0.0
    %587 = vmatprep.subr.mxu0 0.0
    %588 = vmatpush1.msra.mxu0 0.0
    %589 = vmatprep.subr.mxu0 0.0
    %590 = vmatpush1.msra.mxu0 0.0
    %591 = vmatprep.subr.mxu0 0.0
    %592 = vmatpush1.msra.mxu0 0.0
    %593 = vmatprep.subr.mxu0 0.0
    %594 = vmatpush1.msra.mxu0 0.0
    %595 = vmatprep.subr.mxu0 0.0
    %596 = vmatpush1.msra.mxu0 0.0
    %597 = vmatprep.subr.mxu0 0.0
    %598 = vmatpush1.msra.mxu0 0.0
    %599 = vmatprep.subr.mxu0 0.0
    %600 = vmatpush1.msra.mxu0 0.0
    %601 = vmatprep.subr.mxu0 0.0
    %602 = vmatpush1.msra.mxu0 0.0
    %603 = vmatprep.subr.mxu0 0.0
    %604 = vmatpush1.msra.mxu0 0.0
    %605 = vmatprep.subr.mxu0 0.0
    %606 = vmatpush1.msra.mxu0 0.0
    %607 = vmatprep.subr.mxu0 0.0
    %608 = vmatpush1.msra.mxu0 0.0
    %609 = vmatprep.subr.mxu0 0.0
    %610 = vmatpush1.msra.mxu0 0.0
    %611 = vmatprep.subr.mxu0 0.0
    %612 = vmatpush1.msra.mxu0 0.0
    %613 = vmatprep.mubr.f32.mxu0 0.0
    %614 = vmatmul.mubr.f32.gmra.mrb[0].mxu0 %v476
    %v615 = vpop.f32.mrb[0].mxu0
    %v616 = vadd.f32 %v470, %v615
    %v617 = vpop.f32.mrb[0].mxu0
    %618 = vdwg.mxu0
    %v619 = vld [vmem:[#allocation6] sm:$0xff]
    %v620 = vld [vmem:[#allocation6 + $0x8] sm:$0xff]
    %v621 = vld [vmem:[#allocation6 + $0x10] sm:$0xff]
    %v622 = vld [vmem:[#allocation6 + $0x18] sm:$0xff]
    %v623 = vld [vmem:[#allocation6 + $0x20] sm:$0xff]
    %v624 = vld [vmem:[#allocation6 + $0x28] sm:$0xff]
    %v625 = vld [vmem:[#allocation6 + $0x30] sm:$0xff]
    %v626 = vld [vmem:[#allocation6 + $0x38] sm:$0xff]
    %v627 = vld [vmem:[#allocation6 + $0x40] sm:$0xff]
    %v628 = vld [vmem:[#allocation6 + $0x48] sm:$0xff]
    %v629 = vld [vmem:[#allocation6 + $0x50] sm:$0xff]
    %v630 = vld [vmem:[#allocation6 + $0x58] sm:$0xff]
    %v631 = vld [vmem:[#allocation6 + $0x60] sm:$0xff]
    %v632 = vld [vmem:[#allocation6 + $0x68] sm:$0xff]
    %v633 = vld [vmem:[#allocation6 + $0x70] sm:$0xff]
    %v634 = vld [vmem:[#allocation6 + $0x78] sm:$0xff]
    %v635 = vld [vmem:[#allocation6 + $0x80] sm:$0xff]
    %v636 = vld [vmem:[#allocation6 + $0x88] sm:$0xff]
    %v637 = vld [vmem:[#allocation6 + $0x90] sm:$0xff]
    %v638 = vld [vmem:[#allocation6 + $0x98] sm:$0xff]
    %v639 = vld [vmem:[#allocation6 + $0xa0] sm:$0xff]
    %v640 = vld [vmem:[#allocation6 + $0xa8] sm:$0xff]
    %v641 = vld [vmem:[#allocation6 + $0xb0] sm:$0xff]
    %v642 = vld [vmem:[#allocation6 + $0xb8] sm:$0xff]
    %v643 = vld [vmem:[#allocation6 + $0xc0] sm:$0xff]
    %v644 = vld [vmem:[#allocation6 + $0xc8] sm:$0xff]
    %v645 = vld [vmem:[#allocation6 + $0xd0] sm:$0xff]
    %v646 = vld [vmem:[#allocation6 + $0xd8] sm:$0xff]
    %v647 = vld [vmem:[#allocation6 + $0xe0] sm:$0xff]
    %v648 = vld [vmem:[#allocation6 + $0xe8] sm:$0xff]
    %v649 = vld [vmem:[#allocation6 + $0xf0] sm:$0xff]
    %v650 = vld [vmem:[#allocation6 + $0xf8] sm:$0xff]
    %v651 = vld [vmem:[#allocation6 + $0x100] sm:$0xff]
    %v652 = vld [vmem:[#allocation6 + $0x108] sm:$0xff]
    %v653 = vld [vmem:[#allocation6 + $0x110] sm:$0xff]
    %v654 = vld [vmem:[#allocation6 + $0x118] sm:$0xff]
    %v655 = vld [vmem:[#allocation6 + $0x120] sm:$0xff]
    %v656 = vld [vmem:[#allocation6 + $0x128] sm:$0xff]
    %v657 = vld [vmem:[#allocation6 + $0x130] sm:$0xff]
    %v658 = vld [vmem:[#allocation6 + $0x138] sm:$0xff]
    %v659 = vld [vmem:[#allocation6 + $0x140] sm:$0xff]
    %v660 = vld [vmem:[#allocation6 + $0x148] sm:$0xff]
    %v661 = vld [vmem:[#allocation6 + $0x150] sm:$0xff]
    %v662 = vld [vmem:[#allocation6 + $0x158] sm:$0xff]
    %v663 = vld [vmem:[#allocation6 + $0x160] sm:$0xff]
    %v664 = vld [vmem:[#allocation6 + $0x168] sm:$0xff]
    %v665 = vld [vmem:[#allocation6 + $0x170] sm:$0xff]
    %v666 = vld [vmem:[#allocation6 + $0x178] sm:$0xff]
    %v667 = vld [vmem:[%s6] sm:$0x7]
    %v669 = vlaneseq
    %v670 = vshrl.u32 %v669, 7
    %v671 = vsub.s32 0, %v670
    %v672 = vrot.slane %v667, %v671
    %v673 = vlaneseq
    %v674 = vshrl.u32 %v673, 7
    %v675 = vsub.s32 1, %v674
    %v676 = vrot.slane %v667, %v675
    %v677 = vlaneseq
    %v678 = vshrl.u32 %v677, 7
    %v679 = vsub.s32 2, %v678
    %v680 = vrot.slane %v667, %v679
    %684 = vmatprep.subr.mxu0 %v620
    %685 = vmatpush1.msra.mxu0 %v619
    %686 = vmatprep.subr.mxu0 %v623
    %687 = vmatpush1.msra.mxu0 %v622
    %688 = vmatprep.subr.mxu0 %v626
    %689 = vmatpush1.msra.mxu0 %v625
    %690 = vmatprep.subr.mxu0 %v629
    %691 = vmatpush1.msra.mxu0 %v628
    %692 = vmatprep.subr.mxu0 %v632
    %693 = vmatpush1.msra.mxu0 %v631
    %694 = vmatprep.subr.mxu0 %v635
    %695 = vmatpush1.msra.mxu0 %v634
    %696 = vmatprep.subr.mxu0 %v638
    %697 = vmatpush1.msra.mxu0 %v637
    %698 = vmatprep.subr.mxu0 %v641
    %699 = vmatpush1.msra.mxu0 %v640
    %700 = vmatprep.subr.mxu0 %v644
    %701 = vmatpush1.msra.mxu0 %v643
    %702 = vmatprep.subr.mxu0 %v647
    %703 = vmatpush1.msra.mxu0 %v646
    %704 = vmatprep.subr.mxu0 %v650
    %705 = vmatpush1.msra.mxu0 %v649
    %706 = vmatprep.subr.mxu0 %v653
    %707 = vmatpush1.msra.mxu0 %v652
    %708 = vmatprep.subr.mxu0 %v656
    %709 = vmatpush1.msra.mxu0 %v655
    %710 = vmatprep.subr.mxu0 %v659
    %711 = vmatpush1.msra.mxu0 %v658
    %712 = vmatprep.subr.mxu0 %v662
    %713 = vmatpush1.msra.mxu0 %v661
    %714 = vmatprep.subr.mxu0 %v665
    %715 = vmatpush1.msra.mxu0 %v664
    %716 = vmatprep.subr.mxu0 0.0
    %717 = vmatpush1.msra.mxu0 0.0
    %718 = vmatprep.subr.mxu0 0.0
    %719 = vmatpush1.msra.mxu0 0.0
    %720 = vmatprep.subr.mxu0 0.0
    %721 = vmatpush1.msra.mxu0 0.0
    %722 = vmatprep.subr.mxu0 0.0
    %723 = vmatpush1.msra.mxu0 0.0
    %724 = vmatprep.subr.mxu0 0.0
    %725 = vmatpush1.msra.mxu0 0.0
    %726 = vmatprep.subr.mxu0 0.0
    %727 = vmatpush1.msra.mxu0 0.0
    %728 = vmatprep.subr.mxu0 0.0
    %729 = vmatpush1.msra.mxu0 0.0
    %730 = vmatprep.subr.mxu0 0.0
    %731 = vmatpush1.msra.mxu0 0.0
    %732 = vmatprep.subr.mxu0 0.0
    %733 = vmatpush1.msra.mxu0 0.0
    %734 = vmatprep.subr.mxu0 0.0
    %735 = vmatpush1.msra.mxu0 0.0
    %736 = vmatprep.subr.mxu0 0.0
    %737 = vmatpush1.msra.mxu0 0.0
    %738 = vmatprep.subr.mxu0 0.0
    %739 = vmatpush1.msra.mxu0 0.0
    %740 = vmatprep.subr.mxu0 0.0
    %741 = vmatpush1.msra.mxu0 0.0
    %742 = vmatprep.subr.mxu0 0.0
    %743 = vmatpush1.msra.mxu0 0.0
    %744 = vmatprep.subr.mxu0 0.0
    %745 = vmatpush1.msra.mxu0 0.0
    %746 = vmatprep.subr.mxu0 0.0
    %747 = vmatpush1.msra.mxu0 0.0
    %748 = vmatprep.mubr.f32.mxu0 0.0
    %749 = vmatmul.mubr.f32.gmra.mrb[0].mxu0 %v450
    %v750 = vpop.f32.mrb[0].mxu0
    %v751 = vadd.f32 %v672, %v750
    %v752 = vpop.f32.mrb[0].mxu0
    %v753 = vadd.f32 %v676, %v752
    %754 = vdwg.mxu0
    %755 = vmatprep.subr.mxu0 0.0
    %756 = vmatpush1.msra.mxu0 %v621
    %757 = vmatprep.subr.mxu0 0.0
    %758 = vmatpush1.msra.mxu0 %v624
    %759 = vmatprep.subr.mxu0 0.0
    %760 = vmatpush1.msra.mxu0 %v627
    %761 = vmatprep.subr.mxu0 0.0
    %762 = vmatpush1.msra.mxu0 %v630
    %763 = vmatprep.subr.mxu0 0.0
    %764 = vmatpush1.msra.mxu0 %v633
    %765 = vmatprep.subr.mxu0 0.0
    %766 = vmatpush1.msra.mxu0 %v636
    %767 = vmatprep.subr.mxu0 0.0
    %768 = vmatpush1.msra.mxu0 %v639
    %769 = vmatprep.subr.mxu0 0.0
    %770 = vmatpush1.msra.mxu0 %v642
    %771 = vmatprep.subr.mxu0 0.0
    %772 = vmatpush1.msra.mxu0 %v645
    %773 = vmatprep.subr.mxu0 0.0
    %774 = vmatpush1.msra.mxu0 %v648
    %775 = vmatprep.subr.mxu0 0.0
    %776 = vmatpush1.msra.mxu0 %v651
    %777 = vmatprep.subr.mxu0 0.0
    %778 = vmatpush1.msra.mxu0 %v654
    %779 = vmatprep.subr.mxu0 0.0
    %780 = vmatpush1.msra.mxu0 %v657
    %781 = vmatprep.subr.mxu0 0.0
    %782 = vmatpush1.msra.mxu0 %v660
    %783 = vmatprep.subr.mxu0 0.0
    %784 = vmatpush1.msra.mxu0 %v663
    %785 = vmatprep.subr.mxu0 0.0
    %786 = vmatpush1.msra.mxu0 %v666
    %787 = vmatprep.subr.mxu0 0.0
    %788 = vmatpush1.msra.mxu0 0.0
    %789 = vmatprep.subr.mxu0 0.0
    %790 = vmatpush1.msra.mxu0 0.0
    %791 = vmatprep.subr.mxu0 0.0
    %792 = vmatpush1.msra.mxu0 0.0
    %793 = vmatprep.subr.mxu0 0.0
    %794 = vmatpush1.msra.mxu0 0.0
    %795 = vmatprep.subr.mxu0 0.0
    %796 = vmatpush1.msra.mxu0 0.0
    %797 = vmatprep.subr.mxu0 0.0
    %798 = vmatpush1.msra.mxu0 0.0
    %799 = vmatprep.subr.mxu0 0.0
    %800 = vmatpush1.msra.mxu0 0.0
    %801 = vmatprep.subr.mxu0 0.0
    %802 = vmatpush1.msra.mxu0 0.0
    %803 = vmatprep.subr.mxu0 0.0
    %804 = vmatpush1.msra.mxu0 0.0
    %805 = vmatprep.subr.mxu0 0.0
    %806 = vmatpush1.msra.mxu0 0.0
    %807 = vmatprep.subr.mxu0 0.0
    %808 = vmatpush1.msra.mxu0 0.0
    %809 = vmatprep.subr.mxu0 0.0
    %810 = vmatpush1.msra.mxu0 0.0
    %811 = vmatprep.subr.mxu0 0.0
    %812 = vmatpush1.msra.mxu0 0.0
    %813 = vmatprep.subr.mxu0 0.0
    %814 = vmatpush1.msra.mxu0 0.0
    %815 = vmatprep.subr.mxu0 0.0
    %816 = vmatpush1.msra.mxu0 0.0
    %817 = vmatprep.subr.mxu0 0.0
    %818 = vmatpush1.msra.mxu0 0.0
    %819 = vmatprep.mubr.f32.mxu0 0.0
    %820 = vmatmul.mubr.f32.gmra.mrb[0].mxu0 %v450
    %v821 = vpop.f32.mrb[0].mxu0
    %v822 = vadd.f32 %v680, %v821
    %v823 = vpop.f32.mrb[0].mxu0
    %824 = vdwg.mxu0
    %v825 = vadd.f32 %v545, %v751
    %v826 = vxor.u32 %v825, 2147483648
    %v827 = vmul.f32 %v826, 1.442695
    %v828 = vpow.pop %v827
    %v829 = vadd.f32 %v828, 1.0
    %v830 = vrcp.pop %v829
    %v831 = vmul.f32 1.0, %v830
    %v832 = vadd.f32 %v547, %v753
    %v833 = vxor.u32 %v832, 2147483648
    %v834 = vmul.f32 %v833, 1.442695
    %v835 = vpow.pop %v834
    %v836 = vadd.f32 %v835, 1.0
    %v837 = vrcp.pop %v836
    %v838 = vmul.f32 1.0, %v837
    %v839 = vmul.f32 %v831, %v822
    %v840 = vadd.f32 %v616, %v839
    %v841 = vtanh.pop %v840
    %v842 = vsub.f32 1.0, %v838
    %v843 = vmul.f32 %v842, %v841
    %v844 = vmul.f32 %v838, %v450
    %v845 = vadd.f32 %v843, %v844
    %846 = vst [vmem:[%s7] sm:$0xff] %v845
    // Predicated region
    $region266: #{encoder_rnn_forward.1} parent=1 // pred_check
      _
    $region267: #{encoder_rnn_forward.1} parent=1 // pred_check_branch
      %848 = sbr.rel (0) target = $region269
    $region268: #{encoder_rnn_forward.1} parent=1 // pred_region
      _
    $region269: #{encoder_rnn_forward.1} parent=1 // pred_fallthru
      _
    // Predicated region
    $region270: #{encoder_rnn_forward.1} parent=1 // pred_check
      _
    $region271: #{encoder_rnn_forward.1} parent=1 // pred_check_branch
      %850 = sbr.rel (0) target = $region273
    $region272: #{encoder_rnn_forward.1} parent=1 // pred_region
      _
    $region273: #{encoder_rnn_forward.1} parent=1 // pred_fallthru
      _
    %851 = vsyncpa [#allocation7], 1
  %852 = vsyncmov [#allocation3]
  %s853 = vpop.sfrf %852
  %p854 = scmp.eq.s32.totalorder %s853, 0
  %p855 = pneg %p854
  %857 = shalt.err (%p855)
  %s858 = scalar_lea.sflag [#allocation3], 1
  %859 = vsyncmov %s858
  %s860 = vpop.sfrf %859
  %p861 = scmp.eq.s32.totalorder %s860, 0
  %p862 = pneg %p861
  %864 = shalt.err (%p862)
  %s865 = scalar_lea.sflag [#allocation3], 2
  %866 = vsyncmov %s865
  %s867 = vpop.sfrf %866
  %p868 = scmp.eq.s32.totalorder %s867, 0
  %p869 = pneg %p868
  %871 = shalt.err (%p869)
  %s872 = scalar_lea.sflag [#allocation3], 3
  %873 = vsyncmov %s872
  %s874 = vpop.sfrf %873
  %p875 = scmp.eq.s32.totalorder %s874, 0
  %p876 = pneg %p875
  %878 = shalt.err (%p876)
  %s879 = scalar_lea.sflag [#allocation3], 4
  %880 = vsyncmov %s879
  %s881 = vpop.sfrf %880
  %p882 = scmp.eq.s32.totalorder %s881, 0
  %p883 = pneg %p882
  %885 = shalt.err (%p883)
  %s886 = scalar_lea.sflag [#allocation3], 5
  %887 = vsyncmov %s886
  %s888 = vpop.sfrf %887
  %p889 = scmp.eq.s32.totalorder %s888, 0
  %p890 = pneg %p889
  %892 = shalt.err (%p890)
  %s893 = scalar_lea.sflag [#allocation3], 6
  %894 = vsyncmov %s893
  %s895 = vpop.sfrf %894
  %p896 = scmp.eq.s32.totalorder %s895, 0
  %p897 = pneg %p896
  %899 = shalt.err (%p897)
  %s900 = scalar_lea.sflag [#allocation3], 7
  %901 = vsyncmov %s900
  %s902 = vpop.sfrf %901
  %p903 = scmp.eq.s32.totalorder %s902, 0
  %p904 = pneg %p903
  %906 = shalt.err (%p904)

</llo_original>
